<compile_context>
chip_gen: v7x
topology: tpu7x:2x2x1
jax: 0.10.0
libtpu: 0.0.40
codegen_flags: <defaults>
</compile_context>

<pallas_src>
import numpy as np
import jax
import jax.numpy as jnp
from jax.experimental import pallas as pl
from jax.experimental.pallas import tpu as pltpu

POS3D_GRID_SIZE = (32, 32, 8)   # (H, W, D) grid for the 3-D sincos positional embedding
EMB_DIM = 256                   # emb_dim (768 in the original; kept small here)
CLIP_DIM = 1024                 # hard-coded in AnimateFlow3D.__init__: Linear(1024, emb_dim)
LOCAL_DIM = 72                  # hard-coded in AnimateFlow3D.__init__: Linear(72, emb_dim)
PATCH = 16                      # synthetic CLIP patch size


# ---------------------------------------------------------------------------
# Generic Pallas linear: y = x @ w + b  (bf16 MXU inputs, f32 accumulation)
# ---------------------------------------------------------------------------
def _linear_bias_kernel(x_ref, w_ref, b_ref, o_ref):
    o_ref[...] = (
        jnp.dot(x_ref[...], w_ref[...], preferred_element_type=jnp.float32)
        + b_ref[...]
    ).astype(o_ref.dtype)


def pallas_linear(x, w, b, tile_m=256):
    """y = x @ w + b with x:(M,K), w:(K,N), b:(N,).

    No host-side padding / output slicing: N must be a multiple of 128 (true at
    every call site: 256 / 1024) and K is passed as a full-array block dim.  M
    is tiled in `tile_m`-row "parallel" blocks when it divides evenly (use 128
    on v5e); otherwise a single full-M block is used, which bypasses the
    (8,128) divisibility rule.

    TODO(synk): at real model sizes (EMB_DIM=768, M = B*257 CLIP tokens) also
    tile K with an f32 VMEM accumulator (3-D grid, 256-grain on v6e/v7x) and
    set an explicit vmem_limit_bytes for v7x; at the sizes used here the whole
    (K,N) bf16 weight is < 2 MiB and stays resident.
    """
    M, K = x.shape
    Kw, N = w.shape
    assert K == Kw and N % 128 == 0, (x.shape, w.shape)
    tm = tile_m if (M % tile_m == 0) else M
    xb = x.astype(jnp.bfloat16)
    wb = w.astype(jnp.bfloat16)
    b2 = b.reshape(1, N).astype(jnp.float32)
    return pl.pallas_call(
        _linear_bias_kernel,
        out_shape=jax.ShapeDtypeStruct((M, N), jnp.float32),
        grid_spec=pltpu.PrefetchScalarGridSpec(
            num_scalar_prefetch=0,
            grid=(M // tm,),
            in_specs=[
                pl.BlockSpec((tm, K), lambda i: (i, 0)),
                pl.BlockSpec((K, N), lambda i: (0, 0)),
                pl.BlockSpec((1, N), lambda i: (0, 0)),
            ],
            out_specs=pl.BlockSpec((tm, N), lambda i: (i, 0)),
        ),
        compiler_params=pltpu.CompilerParams(dimension_semantics=("parallel",)),
    )(xb, wb, b2)


# ---------------------------------------------------------------------------
# Fused conditioning kernel:
#   out[b] = concat(text[b], visual_tokens[b] @ gw + gb, uv_desc[b] @ lw + lb)
# Replaces two projection pallas_calls + an XLA concat with one kernel.
# ---------------------------------------------------------------------------
def pallas_fused_condition(text_tokens, visual_tokens, gw, gb, uv_desc, lw, lb):
    B, S, E = text_tokens.shape
    _, T, KG = visual_tokens.shape
    _, P, KL = uv_desc.shape
    Stot = S + T + P

    def kernel(text_ref, vis_ref, gw_ref, gb_ref, uv_ref, lw_ref, lb_ref, o_ref):
        # pass-through text tokens
        o_ref[0, 0:S, :] = text_ref[0]
        # global projection head (cls + patch tokens), MXU bf16 -> f32
        g = jnp.dot(vis_ref[0], gw_ref[...], preferred_element_type=jnp.float32)
        o_ref[0, S:S + T, :] = g + gb_ref[...]
        # local projection head (3-D sincos uv descriptors), MXU bf16 -> f32
        l = jnp.dot(uv_ref[0], lw_ref[...], preferred_element_type=jnp.float32)
        o_ref[0, S + T:S + T + P, :] = l + lb_ref[...]

    return pl.pallas_call(
        kernel,
        out_shape=jax.ShapeDtypeStruct((B, Stot, E), jnp.float32),
        grid_spec=pltpu.PrefetchScalarGridSpec(
            num_scalar_prefetch=0,
            grid=(B,),                      # >= 2 "parallel" steps -> both v7x TCs busy
            in_specs=[
                pl.BlockSpec((1, S, E), lambda b: (b, 0, 0)),
                pl.BlockSpec((1, T, KG), lambda b: (b, 0, 0)),
                pl.BlockSpec((KG, E), lambda b: (0, 0)),   # resident bf16 weight
                pl.BlockSpec((1, E), lambda b: (0, 0)),
                pl.BlockSpec((1, P, KL), lambda b: (b, 0, 0)),
                pl.BlockSpec((KL, E), lambda b: (0, 0)),
                pl.BlockSpec((1, E), lambda b: (0, 0)),
            ],
            out_specs=pl.BlockSpec((1, Stot, E), lambda b: (b, 0, 0)),
        ),
        compiler_params=pltpu.CompilerParams(dimension_semantics=("parallel",)),
    )(
        text_tokens.astype(jnp.float32),
        visual_tokens.astype(jnp.bfloat16),
        gw.astype(jnp.bfloat16),
        gb.reshape(1, E).astype(jnp.float32),
        uv_desc.astype(jnp.bfloat16),
        lw.astype(jnp.bfloat16),
        lb.reshape(1, E).astype(jnp.float32),
    )


# ---------------------------------------------------------------------------
# FiLM kernel: out[r, :] = x[r, :] * (1 + scale[r]) + shift[r]
# scale/shift live in SMEM (one scalar per row); x/out are a lane-dense block.
# ---------------------------------------------------------------------------
def pallas_film(x2d, scale_vec, shift_vec):
    R, L = x2d.shape

    def kernel(scale_ref, shift_ref, x_ref, o_ref):
        for r in range(R):                  # R = B*C is small here (static unroll)
            s = scale_ref[r]
            t = shift_ref[r]
            o_ref[pl.ds(r, 1), :] = x_ref[pl.ds(r, 1), :] * (1.0 + s) + t

    # TODO(synk): for real latent sizes, tile the row axis over a "parallel"
    # grid (e.g. (256, L) blocks) instead of the static per-row loop.
    return pl.pallas_call(
        kernel,
        out_shape=jax.ShapeDtypeStruct((R, L), jnp.float32),
        grid=(1,),
        in_specs=[
            pl.BlockSpec(memory_space=pltpu.MemorySpace.SMEM),
            pl.BlockSpec(memory_space=pltpu.MemorySpace.SMEM),
            pl.BlockSpec((R, L), lambda i: (0, 0)),
        ],
        out_specs=pl.BlockSpec((R, L), lambda i: (0, 0)),
    )(scale_vec.astype(jnp.float32), shift_vec.astype(jnp.float32),
      x2d.astype(jnp.float32))


# ---------------------------------------------------------------------------
# Positional embedding (faithful port, including the original's quirky omega
# denominator `dim // -1` and the (d,h,w)-flatten -> (h,w,d) reshape).
# ---------------------------------------------------------------------------
def posemb_sincos_3d(h, w, d, dim, temperature=10000, dtype=jnp.float32):
    z, y, x = jnp.meshgrid(jnp.arange(d), jnp.arange(h), jnp.arange(w), indexing="ij")
    assert dim % 6 == 0, "feature dimension must be multiple of 6 for sincos emb"
    omega = jnp.arange(dim // 6).astype(jnp.float32) / (dim // -1)
    omega = 1.0 / (temperature ** omega)
    z = z.reshape(-1)[:, None] * omega[None, :]
    y = y.reshape(-1)[:, None] * omega[None, :]
    x = x.reshape(-1)[:, None] * omega[None, :]
    pe = jnp.concatenate(
        (jnp.sin(x), jnp.cos(x), jnp.sin(y), jnp.cos(y), jnp.sin(z), jnp.cos(z)), axis=1
    )
    return pe.astype(dtype)


# ---------------------------------------------------------------------------
# Parameters.  NOTE: the original __init__ zero-inits both projection heads via
# zero_module(); small random values keep the kernel output non-trivial.
# Matmul weights are stored in bf16 ONCE at init (MXU-native on v6e/v7x);
# biases and epilogues stay f32 (v5e VPU has no bf16 path).
# ---------------------------------------------------------------------------
def init_params(key, emb_dim=EMB_DIM, latent_channels=4):
    ks = jax.random.split(key, 9)
    s = 0.02

    def w(k, shape, dtype=jnp.float32):
        return (s * jax.random.normal(k, shape, jnp.float32)).astype(dtype)

    return {
        "global_proj_w": w(ks[0], (CLIP_DIM, emb_dim), jnp.bfloat16),
        "global_proj_b": w(ks[1], (emb_dim,)),
        "local_proj_w": w(ks[2], (LOCAL_DIM, emb_dim), jnp.bfloat16),
        "local_proj_b": w(ks[3], (emb_dim,)),
        # synthetic CLIP patch embedding
        "clip_patch_w": w(ks[4], (3 * PATCH * PATCH, CLIP_DIM), jnp.bfloat16),
        "clip_patch_b": w(ks[5], (CLIP_DIM,)),
        "clip_cls": w(ks[6], (CLIP_DIM,)),
        # synthetic UNet FiLM conditioning (tiny heads, evaluated in XLA)
        "unet_time_w": w(ks[7], (64, latent_channels)),
        "unet_time_b": jnp.zeros((latent_channels,), jnp.float32),
        "unet_ctx_w": w(ks[8], (emb_dim, latent_channels)),
        "unet_ctx_b": jnp.zeros((latent_channels,), jnp.float32),
    }


# ---------------------------------------------------------------------------
# Stand-ins for external submodules
# ---------------------------------------------------------------------------
def clip_visual_encoder(params, image_2d):
    # TODO(synk): the real CLIPVisionModel (pretrained ViT-L/14 transformer) is an
    # external dependency; this stand-in reproduces only the patch-embed + CLS/pooler
    # interface (last_hidden_state, pooler_output) with identical shapes/dtypes.
    # TODO(synk): at real ViT-L image sizes, fuse this im2col (reshape+transpose)
    # into the patch-embed kernel via a (B, ph) grid over the NCHW image instead of
    # materializing the patch slab in HBM first (avoids ~2x image HBM traffic).
    B, Cc, H, W = image_2d.shape
    ph, pw = H // PATCH, W // PATCH
    patches = image_2d.reshape(B, Cc, ph, PATCH, pw, PATCH)
    patches = patches.transpose(0, 2, 4, 1, 3, 5).reshape(B * ph * pw, Cc * PATCH * PATCH)
    patch_emb = pallas_linear(patches, params["clip_patch_w"], params["clip_patch_b"])
    patch_emb = patch_emb.reshape(B, ph * pw, CLIP_DIM)
    cls = jnp.broadcast_to(params["clip_cls"][None, None, :], (B, 1, CLIP_DIM))
    last_hidden_state = jnp.concatenate([cls, patch_emb], axis=1)
    pooler_output = last_hidden_state[:, 0]
    return last_hidden_state, pooler_output


def sinusoidal_time_emb(t, dim=64):
    half = dim // 2
    freqs = jnp.exp(-jnp.log(10000.0) * jnp.arange(half).astype(jnp.float32) / half)
    args = t.astype(jnp.float32)[:, None] * freqs[None, :]
    return jnp.concatenate([jnp.sin(args), jnp.cos(args)], axis=-1)


def unet_stub(params, noisy_latents, timesteps, encoder_hidden_states):
    # TODO(synk): the real diffusers 3-D conditional UNet is an external module;
    # this stand-in applies FiLM conditioning (timestep emb + pooled context) to
    # the latents, preserving the (B, C, F, H, W) input/output contract.
    B, C, F, H, W = noisy_latents.shape
    t_emb = sinusoidal_time_emb(timesteps, 64)                        # (B, 64)
    ctx = encoder_hidden_states.mean(axis=1)                          # (B, emb)
    # The scale/shift heads are (B,64)x(64,C) and (B,emb)x(emb,C) -- far too small
    # to justify their own pallas_call (the forward is launch-overhead-bound), so
    # they are folded into XLA and consumed by the FiLM kernel as SMEM scalars.
    scale = t_emb @ params["unet_time_w"] + params["unet_time_b"]     # (B, C)
    shift = ctx @ params["unet_ctx_w"] + params["unet_ctx_b"]         # (B, C)
    x2d = noisy_latents.reshape(B * C, F * H * W)                     # free reshape
    out2d = pallas_film(x2d, scale.reshape(-1), shift.reshape(-1))
    return out2d.reshape(B, C, F, H, W)


# ---------------------------------------------------------------------------
# AnimateFlow3D forward
# ---------------------------------------------------------------------------
def prepare_condition(params, pos_3d, encoder_hidden_states, point_uv, global_image_2d):
    """Returns the already-concatenated encoder hidden states
    concat([text, global_projection(visual_tokens), local_projection(uv)], axis=1)
    computed in a single fused Pallas kernel (same semantics as the PyTorch
    prepare_condition + the torch.cat in forward)."""
    B = global_image_2d.shape[0]
    last_hidden, pooler = clip_visual_encoder(params, global_image_2d)
    vit_patch_embedding = last_hidden[:, 1:]
    grid_size = int(np.sqrt(vit_patch_embedding.shape[1]))
    vit_patch_embedding = vit_patch_embedding.reshape(B, grid_size * grid_size, -1)
    visual_tokens = jnp.concatenate([pooler[:, None, :], vit_patch_embedding], axis=1)

    # gather (glue): pos_3d[point_uv[:,:,1], point_uv[:,:,0], point_uv[:,:,2]]
    # TODO(synk): this gather could be folded into the fused-condition kernel via
    # PrefetchScalarGridSpec + a pl.Element row-gather BlockSpec on a flattened
    # (H*W*D, 72) pos_3d; left in XLA at these sizes.
    uv_descriptor = pos_3d[point_uv[:, :, 1], point_uv[:, :, 0], point_uv[:, :, 2]]

    return pallas_fused_condition(
        encoder_hidden_states, visual_tokens,
        params["global_proj_w"], params["global_proj_b"],
        uv_descriptor,
        params["local_proj_w"], params["local_proj_b"])


def animate_flow3d_forward(params, pos_3d, noisy_latents, timesteps,
                           encoder_hidden_states, global_image, point_uv,
                           global_image_2d=None, video_conditions=None):
    # global_image is unused by AnimateFlow3D.prepare_condition (as in PyTorch).
    ehs = prepare_condition(params, pos_3d, encoder_hidden_states, point_uv,
                            global_image_2d)
    model_pred = unet_stub(params, noisy_latents, timesteps, ehs)
    return model_pred


# ---------------------------------------------------------------------------
if __name__ == "__main__":
    key = jax.random.PRNGKey(0)
    k_par, k1, k2, k3, k4, k5 = jax.random.split(key, 6)

    B = 2          # batch
    C = 4          # latent channels
    Fr = 4         # latent frames
    Hl = Wl = 8    # latent spatial
    S = 8          # text tokens
    P = 16         # number of query points
    H2d = W2d = 32 # global_image_2d spatial (gives a 2x2 ViT patch grid)

    params = init_params(k_par, emb_dim=EMB_DIM, latent_channels=C)

    Hg, Wg, Dg = POS3D_GRID_SIZE
    pos_3d = posemb_sincos_3d(Hg, Wg, Dg, LOCAL_DIM).reshape(Hg, Wg, Dg, LOCAL_DIM)

    noisy_latents = jax.random.normal(k1, (B, C, Fr, Hl, Wl), jnp.float32)
    timesteps = jax.random.randint(k2, (B,), 0, 1000)
    encoder_hidden_states = jax.random.normal(k3, (B, S, EMB_DIM), jnp.float32)
    global_image = jax.random.normal(k4, (B, 3, H2d, W2d), jnp.float32)
    global_image_2d = jax.random.normal(k5, (B, 3, H2d, W2d), jnp.float32)
    point_uv = jnp.stack([
        jax.random.randint(jax.random.PRNGKey(1), (B, P), 0, Wg),   # x
        jax.random.randint(jax.random.PRNGKey(2), (B, P), 0, Hg),   # y
        jax.random.randint(jax.random.PRNGKey(3), (B, P), 0, Dg),   # z
    ], axis=-1).astype(jnp.int32)

    out = animate_flow3d_forward(params, pos_3d, noisy_latents, timesteps,
                                 encoder_hidden_states, global_image, point_uv,
                                 global_image_2d=global_image_2d)
    out = jax.block_until_ready(out)
    assert out.shape == noisy_latents.shape and out.dtype == jnp.float32

    # --- check 1: pallas_linear (patch embed) vs plain XLA -------------------
    ph = pw = H2d // PATCH
    patches = global_image_2d.reshape(B, 3, ph, PATCH, pw, PATCH)
    patches = patches.transpose(0, 2, 4, 1, 3, 5).reshape(B * ph * pw, 3 * PATCH * PATCH)
    got_pe = pallas_linear(patches, params["clip_patch_w"], params["clip_patch_b"])
    ref_pe = (patches.astype(jnp.bfloat16).astype(jnp.float32)
              @ params["clip_patch_w"].astype(jnp.float32)) + params["clip_patch_b"]
    assert np.allclose(np.asarray(got_pe), np.asarray(ref_pe), rtol=2e-2, atol=2e-2)

    # --- check 2: fused-condition kernel vs plain XLA ------------------------
    last_hidden, pooler = clip_visual_encoder(params, global_image_2d)
    visual_tokens = jnp.concatenate([pooler[:, None, :], last_hidden[:, 1:]], axis=1)
    uv = pos_3d[point_uv[:, :, 1], point_uv[:, :, 0], point_uv[:, :, 2]]
    got_ehs = pallas_fused_condition(
        encoder_hidden_states, visual_tokens,
        params["global_proj_w"], params["global_proj_b"],
        uv, params["local_proj_w"], params["local_proj_b"])
    vis_bf = visual_tokens.astype(jnp.bfloat16).astype(jnp.float32)
    uv_bf = uv.astype(jnp.bfloat16).astype(jnp.float32)
    ref_g = jnp.einsum("btk,kn->btn", vis_bf,
                       params["global_proj_w"].astype(jnp.float32)) + params["global_proj_b"]
    ref_l = jnp.einsum("bpk,kn->bpn", uv_bf,
                       params["local_proj_w"].astype(jnp.float32)) + params["local_proj_b"]
    ref_ehs = jnp.concatenate([encoder_hidden_states, ref_g, ref_l], axis=1)
    assert np.allclose(np.asarray(got_ehs), np.asarray(ref_ehs), rtol=2e-2, atol=2e-2)

    # --- check 3: FiLM kernel (full unet stub path) vs plain XLA -------------
    t_emb = sinusoidal_time_emb(timesteps, 64)
    scale = t_emb @ params["unet_time_w"] + params["unet_time_b"]
    shift = ref_ehs.mean(axis=1) @ params["unet_ctx_w"] + params["unet_ctx_b"]
    ref_pred = (noisy_latents * (1.0 + scale[:, :, None, None, None])
                + shift[:, :, None, None, None])
    assert np.allclose(np.asarray(out), np.asarray(ref_pred), rtol=2e-2, atol=2e-2)

    print("KERNEL_OK")
</pallas_src>

<mosaic_0001>
module attributes {stable_mosaic.version = 11 : i64} {
  func.func @_linear_bias_kernel(%arg0: i32, %arg1: memref<8x768xbf16, #tpu.memory_space<vmem>>, %arg2: memref<768x1024xbf16, #tpu.memory_space<vmem>>, %arg3: memref<1x1024xf32, #tpu.memory_space<vmem>>, %arg4: memref<8x1024xf32, #tpu.memory_space<vmem>>) attributes {dimension_semantics = [#tpu.dimension_semantics<parallel>], iteration_bounds = array<i64: 1>, scalar_prefetch = 0 : i64, scratch_operands = 0 : i64, tpu.core_type = #tpu.core_type<tc>, window_params = [{transform_indices = @transform_0, window_bounds = array<i64: 8, 768>}, {pipeline_mode = #tpu.pipeline_mode<synchronous>, transform_indices = @transform_1, window_bounds = array<i64: 768, 1024>}, {pipeline_mode = #tpu.pipeline_mode<synchronous>, transform_indices = @transform_2, window_bounds = array<i64: 1, 1024>}, {transform_indices = @transform_3, window_bounds = array<i64: 8, 1024>}]} {
    %c0 = arith.constant 0 : index
    %c0_0 = arith.constant 0 : index
    %0 = vector.load %arg1[%c0, %c0_0] : memref<8x768xbf16, #tpu.memory_space<vmem>>, vector<8x768xbf16>
    %c0_1 = arith.constant 0 : index
    %c0_2 = arith.constant 0 : index
    %1 = vector.load %arg2[%c0_1, %c0_2] : memref<768x1024xbf16, #tpu.memory_space<vmem>>, vector<768x1024xbf16>
    %cst = arith.constant dense<0.000000e+00> : vector<8x1024xf32>
    %2 = tpu.matmul %0, %1, %cst {dimension_numbers = #tpu.dot_dimension_numbers<[1], [0], [0], [1], [0, 0, 1, 1], [], []>} : vector<8x768xbf16>, vector<768x1024xbf16>, vector<8x1024xf32> -> vector<8x1024xf32>
    %c0_3 = arith.constant 0 : index
    %c0_4 = arith.constant 0 : index
    %3 = vector.load %arg3[%c0_3, %c0_4] : memref<1x1024xf32, #tpu.memory_space<vmem>>, vector<1x1024xf32>
    %4 = vector.broadcast %3 : vector<1x1024xf32> to vector<8x1024xf32>
    %5 = arith.addf %2, %4 : vector<8x1024xf32>
    %c0_5 = arith.constant 0 : index
    %c0_6 = arith.constant 0 : index
    %6 = vector.load %arg4[%c0_5, %c0_6] : memref<8x1024xf32, #tpu.memory_space<vmem>>, vector<8x1024xf32>
    tpu.vector_store %arg4[%c0_5, %c0_6], %5 {strides = array<i32>} : memref<8x1024xf32, #tpu.memory_space<vmem>>, vector<8x1024xf32>,
    return
  }
  func.func @transform_0(%arg0: i32) -> (i32, i32) {
    %c0_i32 = arith.constant 0 : i32
    %c0_i32_0 = arith.constant 0 : i32
    return %arg0, %c0_i32 : i32, i32
  }
  func.func @transform_1(%arg0: i32) -> (i32, i32) {
    %c0_i32 = arith.constant 0 : i32
    %c0_i32_0 = arith.constant 0 : i32
    %c0_i32_1 = arith.constant 0 : i32
    return %c0_i32, %c0_i32_0 : i32, i32
  }
  func.func @transform_2(%arg0: i32) -> (i32, i32) {
    %c0_i32 = arith.constant 0 : i32
    %c0_i32_0 = arith.constant 0 : i32
    %c0_i32_1 = arith.constant 0 : i32
    return %c0_i32, %c0_i32_0 : i32, i32
  }
  func.func @transform_3(%arg0: i32) -> (i32, i32) {
    %c0_i32 = arith.constant 0 : i32
    %c0_i32_0 = arith.constant 0 : i32
    return %arg0, %c0_i32 : i32, i32
  }
}

</mosaic_0001>

<llo_original>
// kernel: tpu_custom_call.1
$region0: #{tpu_custom_call.1}
  #allocation0 [shape = 'u32[]', space=smem, size = 0x4, offset = 0x4, fixed_abs, tag = 'smem constant byte address 0x4 - core index']
  #allocation1 [shape = 'u32[144,128]{1,0:T(1,128)}', space=vmem, size = 0x12000, scoped, tag = 'internal scratch']
  %s0 = inlined_call_operand.hbm [shape: bf16[8,768], index: 0, kind: input, shape index: {}]
  %s1 = inlined_call_operand.hbm [shape: bf16[768,1024], index: 1, kind: input, shape index: {}]
  %s2 = inlined_call_operand.hbm [shape: f32[1,1024], index: 2, kind: input, shape index: {}]
  %s3 = inlined_call_operand.hbm [shape: f32[8,1024], index: 3, kind: output, shape index: {}]
  %s4 = sld [smem:[#allocation0]]
  $region34: #{tpu_custom_call.1} parent=0
    _
  %s6 = ssub.s32 1, %s4
  %s7 = scalar_select 0, %s6, %s4
  $region1: #{tpu_custom_call.1} parent=0
    #allocation2 [shape = 'u8[12288]{0}', space=vmem, size = 0x3000, scoped, tag = 'input window, operand 0, single buffered']
    #allocation3 [shape = 's32[1]{0}', space=sflag, size = 0x4, scoped, tag = 'scoped memory for tpu_custom_call.1']
    #allocation4 [shape = 's32[1]{0}', space=sflag, size = 0x4, scoped, tag = 'scoped memory for tpu_custom_call.1']
    #allocation5 [shape = 'u8[1572864]{0}', space=vmem, size = 0x180000, scoped, tag = 'input window, operand 1, single buffered']
    #allocation6 [shape = 's32[1]{0}', space=sflag, size = 0x4, scoped, tag = 'scoped memory for tpu_custom_call.1']
    #allocation7 [shape = 'u8[4096]{0}', space=vmem, size = 0x1000, scoped, tag = 'input window, operand 2, single buffered']
    #allocation8 [shape = 'u8[32768]{0}', space=vmem, size = 0x8000, scoped, tag = 'output window, operand 0, single buffered']
    %8 = vsyncpa [#allocation3], 0
    %9 = vsyncpa [#allocation6], 0
    %10 = vsyncpa [#allocation4], 0
    // Predicated region
    $region2: #{tpu_custom_call.1} parent=1 // pred_check
      _
    $region3: #{tpu_custom_call.1} parent=1 // pred_check_branch
      %12 = sbr.rel (0) target = $region5
    $region4: #{tpu_custom_call.1} parent=1 // pred_region
      %s14 = ssub.s32 384, 384
      %15 = vsyncadd [#allocation3], %s14
      %s17 = sshll.u32 [#allocation2], 4
      %s18 = int_to_ptr.vmem [resolvable:$true] %s17
      %20 = dma.hbm_to_vmem [thread:$0]  %s0, 384, %s18, [#allocation3]
    $region5: #{tpu_custom_call.1} parent=1 // pred_fallthru
      _
    // Predicated region
    $region6: #{tpu_custom_call.1} parent=1 // pred_check
      _
    $region7: #{tpu_custom_call.1} parent=1 // pred_check_branch
      %22 = sbr.rel (0) target = $region9
    $region8: #{tpu_custom_call.1} parent=1 // pred_region
      %s24 = ssub.s32 49152, 49152
      %25 = vsyncadd [#allocation6], %s24
      %s26 = sshll.u32 [#allocation5], 4
      %s27 = int_to_ptr.vmem [resolvable:$true] %s26
      %32 = dma.hbm_to_vmem [thread:$0]  %s1, 49152, %s27, [#allocation6], 512, 512, 32
    $region9: #{tpu_custom_call.1} parent=1 // pred_fallthru
      _
    // Predicated region
    $region10: #{tpu_custom_call.1} parent=1 // pred_check
      _
    $region11: #{tpu_custom_call.1} parent=1 // pred_check_branch
      %34 = sbr.rel (0) target = $region13
    $region12: #{tpu_custom_call.1} parent=1 // pred_region
      %s36 = ssub.s32 128, 128
      %37 = vsyncadd [#allocation6], %s36
      %s39 = sshll.u32 [#allocation7], 4
      %s40 = int_to_ptr.vmem [resolvable:$true] %s39
      %42 = dma.hbm_to_vmem [thread:$0]  %s2, 128, %s40, [#allocation6]
    $region13: #{tpu_custom_call.1} parent=1 // pred_fallthru
      _
    // Predicated region
    $region14: #{tpu_custom_call.1} parent=1 // pred_check
      _
    $region15: #{tpu_custom_call.1} parent=1 // pred_check_branch
      %44 = sbr.rel (0) target = $region17
    $region16: #{tpu_custom_call.1} parent=1 // pred_region
      %45 = dma.done [#allocation3], 384
    $region17: #{tpu_custom_call.1} parent=1 // pred_fallthru
      _
    // Predicated region
    $region18: #{tpu_custom_call.1} parent=1 // pred_check
      _
    $region19: #{tpu_custom_call.1} parent=1 // pred_check_branch
      %47 = sbr.rel (0) target = $region21
    $region20: #{tpu_custom_call.1} parent=1 // pred_region
      %48 = dma.done [#allocation6], 49152
    $region21: #{tpu_custom_call.1} parent=1 // pred_fallthru
      _
    // Predicated region
    $region22: #{tpu_custom_call.1} parent=1 // pred_check
      _
    $region23: #{tpu_custom_call.1} parent=1 // pred_check_branch
      %50 = sbr.rel (0) target = $region25
    $region24: #{tpu_custom_call.1} parent=1 // pred_region
      %51 = dma.done [#allocation6], 128
    $region25: #{tpu_custom_call.1} parent=1 // pred_fallthru
      _
    %v52 = vld [vmem:[#allocation2] sm:$0xff]
    %v53 = vld [vmem:[#allocation2 + $0x8] sm:$0xff]
    %v54 = vld [vmem:[#allocation2 + $0x10] sm:$0xff]
    %v55 = vld [vmem:[#allocation5] sm:$0xff]
    %v56 = vld [vmem:[#allocation5 + $0x8] sm:$0xff]
    %v57 = vld [vmem:[#allocation5 + $0x10] sm:$0xff]
    %v58 = vld [vmem:[#allocation5 + $0x18] sm:$0xff]
    %v59 = vld [vmem:[#allocation5 + $0x20] sm:$0xff]
    %v60 = vld [vmem:[#allocation5 + $0x28] sm:$0xff]
    %v61 = vld [vmem:[#allocation5 + $0x30] sm:$0xff]
    %v62 = vld [vmem:[#allocation5 + $0x38] sm:$0xff]
    %v63 = vld [vmem:[#allocation5 + $0x40] sm:$0xff]
    %v64 = vld [vmem:[#allocation5 + $0x48] sm:$0xff]
    %v65 = vld [vmem:[#allocation5 + $0x50] sm:$0xff]
    %v66 = vld [vmem:[#allocation5 + $0x58] sm:$0xff]
    %v67 = vld [vmem:[#allocation5 + $0x60] sm:$0xff]
    %v68 = vld [vmem:[#allocation5 + $0x68] sm:$0xff]
    %v69 = vld [vmem:[#allocation5 + $0x70] sm:$0xff]
    %v70 = vld [vmem:[#allocation5 + $0x78] sm:$0xff]
    %v71 = vld [vmem:[#allocation5 + $0x80] sm:$0xff]
    %v72 = vld [vmem:[#allocation5 + $0x88] sm:$0xff]
    %v73 = vld [vmem:[#allocation5 + $0x90] sm:$0xff]
    %v74 = vld [vmem:[#allocation5 + $0x98] sm:$0xff]
    %v75 = vld [vmem:[#allocation5 + $0xa0] sm:$0xff]
    %v76 = vld [vmem:[#allocation5 + $0xa8] sm:$0xff]
    %v77 = vld [vmem:[#allocation5 + $0xb0] sm:$0xff]
    %v78 = vld [vmem:[#allocation5 + $0xb8] sm:$0xff]
    %v79 = vld [vmem:[#allocation5 + $0xc0] sm:$0xff]
    %v80 = vld [vmem:[#allocation5 + $0xc8] sm:$0xff]
    %v81 = vld [vmem:[#allocation5 + $0xd0] sm:$0xff]
    %v82 = vld [vmem:[#allocation5 + $0xd8] sm:$0xff]
    %v83 = vld [vmem:[#allocation5 + $0xe0] sm:$0xff]
    %v84 = vld [vmem:[#allocation5 + $0xe8] sm:$0xff]
    %v85 = vld [vmem:[#allocation5 + $0xf0] sm:$0xff]
    %v86 = vld [vmem:[#allocation5 + $0xf8] sm:$0xff]
    %v87 = vld [vmem:[#allocation5 + $0x100] sm:$0xff]
    %v88 = vld [vmem:[#allocation5 + $0x108] sm:$0xff]
    %v89 = vld [vmem:[#allocation5 + $0x110] sm:$0xff]
    %v90 = vld [vmem:[#allocation5 + $0x118] sm:$0xff]
    %v91 = vld [vmem:[#allocation5 + $0x120] sm:$0xff]
    %v92 = vld [vmem:[#allocation5 + $0x128] sm:$0xff]
    %v93 = vld [vmem:[#allocation5 + $0x130] sm:$0xff]
    %v94 = vld [vmem:[#allocation5 + $0x138] sm:$0xff]
    %v95 = vld [vmem:[#allocation5 + $0x140] sm:$0xff]
    %v96 = vld [vmem:[#allocation5 + $0x148] sm:$0xff]
    %v97 = vld [vmem:[#allocation5 + $0x150] sm:$0xff]
    %v98 = vld [vmem:[#allocation5 + $0x158] sm:$0xff]
    %v99 = vld [vmem:[#allocation5 + $0x160] sm:$0xff]
    %v100 = vld [vmem:[#allocation5 + $0x168] sm:$0xff]
    %v101 = vld [vmem:[#allocation5 + $0x170] sm:$0xff]
    %v102 = vld [vmem:[#allocation5 + $0x178] sm:$0xff]
    %v103 = vld [vmem:[#allocation5 + $0x180] sm:$0xff]
    %v104 = vld [vmem:[#allocation5 + $0x188] sm:$0xff]
    %v105 = vld [vmem:[#allocation5 + $0x190] sm:$0xff]
    %v106 = vld [vmem:[#allocation5 + $0x198] sm:$0xff]
    %v107 = vld [vmem:[#allocation5 + $0x1a0] sm:$0xff]
    %v108 = vld [vmem:[#allocation5 + $0x1a8] sm:$0xff]
    %v109 = vld [vmem:[#allocation5 + $0x1b0] sm:$0xff]
    %v110 = vld [vmem:[#allocation5 + $0x1b8] sm:$0xff]
    %v111 = vld [vmem:[#allocation5 + $0x1c0] sm:$0xff]
    %v112 = vld [vmem:[#allocation5 + $0x1c8] sm:$0xff]
    %v113 = vld [vmem:[#allocation5 + $0x1d0] sm:$0xff]
    %v114 = vld [vmem:[#allocation5 + $0x1d8] sm:$0xff]
    %v115 = vld [vmem:[#allocation5 + $0x1e0] sm:$0xff]
    %v116 = vld [vmem:[#allocation5 + $0x1e8] sm:$0xff]
    %v117 = vld [vmem:[#allocation5 + $0x1f0] sm:$0xff]
    %v118 = vld [vmem:[#allocation5 + $0x1f8] sm:$0xff]
    %v119 = vld [vmem:[#allocation5 + $0x200] sm:$0xff]
    %v120 = vld [vmem:[#allocation5 + $0x208] sm:$0xff]
    %v121 = vld [vmem:[#allocation5 + $0x210] sm:$0xff]
    %v122 = vld [vmem:[#allocation5 + $0x218] sm:$0xff]
    %v123 = vld [vmem:[#allocation5 + $0x220] sm:$0xff]
    %v124 = vld [vmem:[#allocation5 + $0x228] sm:$0xff]
    %v125 = vld [vmem:[#allocation5 + $0x230] sm:$0xff]
    %v126 = vld [vmem:[#allocation5 + $0x238] sm:$0xff]
    %v127 = vld [vmem:[#allocation5 + $0x240] sm:$0xff]
    %v128 = vld [vmem:[#allocation5 + $0x248] sm:$0xff]
    %v129 = vld [vmem:[#allocation5 + $0x250] sm:$0xff]
    %v130 = vld [vmem:[#allocation5 + $0x258] sm:$0xff]
    %v131 = vld [vmem:[#allocation5 + $0x260] sm:$0xff]
    %v132 = vld [vmem:[#allocation5 + $0x268] sm:$0xff]
    %v133 = vld [vmem:[#allocation5 + $0x270] sm:$0xff]
    %v134 = vld [vmem:[#allocation5 + $0x278] sm:$0xff]
    %v135 = vld [vmem:[#allocation5 + $0x280] sm:$0xff]
    %v136 = vld [vmem:[#allocation5 + $0x288] sm:$0xff]
    %v137 = vld [vmem:[#allocation5 + $0x290] sm:$0xff]
    %v138 = vld [vmem:[#allocation5 + $0x298] sm:$0xff]
    %v139 = vld [vmem:[#allocation5 + $0x2a0] sm:$0xff]
    %v140 = vld [vmem:[#allocation5 + $0x2a8] sm:$0xff]
    %v141 = vld [vmem:[#allocation5 + $0x2b0] sm:$0xff]
    %v142 = vld [vmem:[#allocation5 + $0x2b8] sm:$0xff]
    %v143 = vld [vmem:[#allocation5 + $0x2c0] sm:$0xff]
    %v144 = vld [vmem:[#allocation5 + $0x2c8] sm:$0xff]
    %v145 = vld [vmem:[#allocation5 + $0x2d0] sm:$0xff]
    %v146 = vld [vmem:[#allocation5 + $0x2d8] sm:$0xff]
    %v147 = vld [vmem:[#allocation5 + $0x2e0] sm:$0xff]
    %v148 = vld [vmem:[#allocation5 + $0x2e8] sm:$0xff]
    %v149 = vld [vmem:[#allocation5 + $0x2f0] sm:$0xff]
    %v150 = vld [vmem:[#allocation5 + $0x2f8] sm:$0xff]
    %v151 = vld [vmem:[#allocation5 + $0x300] sm:$0xff]
    %v152 = vld [vmem:[#allocation5 + $0x308] sm:$0xff]
    %v153 = vld [vmem:[#allocation5 + $0x310] sm:$0xff]
    %v154 = vld [vmem:[#allocation5 + $0x318] sm:$0xff]
    %v155 = vld [vmem:[#allocation5 + $0x320] sm:$0xff]
    %v156 = vld [vmem:[#allocation5 + $0x328] sm:$0xff]
    %v157 = vld [vmem:[#allocation5 + $0x330] sm:$0xff]
    %v158 = vld [vmem:[#allocation5 + $0x338] sm:$0xff]
    %v159 = vld [vmem:[#allocation5 + $0x340] sm:$0xff]
    %v160 = vld [vmem:[#allocation5 + $0x348] sm:$0xff]
    %v161 = vld [vmem:[#allocation5 + $0x350] sm:$0xff]
    %v162 = vld [vmem:[#allocation5 + $0x358] sm:$0xff]
    %v163 = vld [vmem:[#allocation5 + $0x360] sm:$0xff]
    %v164 = vld [vmem:[#allocation5 + $0x368] sm:$0xff]
    %v165 = vld [vmem:[#allocation5 + $0x370] sm:$0xff]
    %v166 = vld [vmem:[#allocation5 + $0x378] sm:$0xff]
    %v167 = vld [vmem:[#allocation5 + $0x380] sm:$0xff]
    %v168 = vld [vmem:[#allocation5 + $0x388] sm:$0xff]
    %v169 = vld [vmem:[#allocation5 + $0x390] sm:$0xff]
    %v170 = vld [vmem:[#allocation5 + $0x398] sm:$0xff]
    %v171 = vld [vmem:[#allocation5 + $0x3a0] sm:$0xff]
    %v172 = vld [vmem:[#allocation5 + $0x3a8] sm:$0xff]
    %v173 = vld [vmem:[#allocation5 + $0x3b0] sm:$0xff]
    %v174 = vld [vmem:[#allocation5 + $0x3b8] sm:$0xff]
    %v175 = vld [vmem:[#allocation5 + $0x3c0] sm:$0xff]
    %v176 = vld [vmem:[#allocation5 + $0x3c8] sm:$0xff]
    %v177 = vld [vmem:[#allocation5 + $0x3d0] sm:$0xff]
    %v178 = vld [vmem:[#allocation5 + $0x3d8] sm:$0xff]
    %v179 = vld [vmem:[#allocation5 + $0x3e0] sm:$0xff]
    %v180 = vld [vmem:[#allocation5 + $0x3e8] sm:$0xff]
    %v181 = vld [vmem:[#allocation5 + $0x3f0] sm:$0xff]
    %v182 = vld [vmem:[#allocation5 + $0x3f8] sm:$0xff]
    %v183 = vld [vmem:[#allocation5 + $0x400] sm:$0xff]
    %v184 = vld [vmem:[#allocation5 + $0x408] sm:$0xff]
    %v185 = vld [vmem:[#allocation5 + $0x410] sm:$0xff]
    %v186 = vld [vmem:[#allocation5 + $0x418] sm:$0xff]
    %v187 = vld [vmem:[#allocation5 + $0x420] sm:$0xff]
    %v188 = vld [vmem:[#allocation5 + $0x428] sm:$0xff]
    %v189 = vld [vmem:[#allocation5 + $0x430] sm:$0xff]
    %v190 = vld [vmem:[#allocation5 + $0x438] sm:$0xff]
    %v191 = vld [vmem:[#allocation5 + $0x440] sm:$0xff]
    %v192 = vld [vmem:[#allocation5 + $0x448] sm:$0xff]
    %v193 = vld [vmem:[#allocation5 + $0x450] sm:$0xff]
    %v194 = vld [vmem:[#allocation5 + $0x458] sm:$0xff]
    %v195 = vld [vmem:[#allocation5 + $0x460] sm:$0xff]
    %v196 = vld [vmem:[#allocation5 + $0x468] sm:$0xff]
    %v197 = vld [vmem:[#allocation5 + $0x470] sm:$0xff]
    %v198 = vld [vmem:[#allocation5 + $0x478] sm:$0xff]
    %v199 = vld [vmem:[#allocation5 + $0x480] sm:$0xff]
    %v200 = vld [vmem:[#allocation5 + $0x488] sm:$0xff]
    %v201 = vld [vmem:[#allocation5 + $0x490] sm:$0xff]
    %v202 = vld [vmem:[#allocation5 + $0x498] sm:$0xff]
    %v203 = vld [vmem:[#allocation5 + $0x4a0] sm:$0xff]
    %v204 = vld [vmem:[#allocation5 + $0x4a8] sm:$0xff]
    %v205 = vld [vmem:[#allocation5 + $0x4b0] sm:$0xff]
    %v206 = vld [vmem:[#allocation5 + $0x4b8] sm:$0xff]
    %v207 = vld [vmem:[#allocation5 + $0x4c0] sm:$0xff]
    %v208 = vld [vmem:[#allocation5 + $0x4c8] sm:$0xff]
    %v209 = vld [vmem:[#allocation5 + $0x4d0] sm:$0xff]
    %v210 = vld [vmem:[#allocation5 + $0x4d8] sm:$0xff]
    %v211 = vld [vmem:[#allocation5 + $0x4e0] sm:$0xff]
    %v212 = vld [vmem:[#allocation5 + $0x4e8] sm:$0xff]
    %v213 = vld [vmem:[#allocation5 + $0x4f0] sm:$0xff]
    %v214 = vld [vmem:[#allocation5 + $0x4f8] sm:$0xff]
    %v215 = vld [vmem:[#allocation5 + $0x500] sm:$0xff]
    %v216 = vld [vmem:[#allocation5 + $0x508] sm:$0xff]
    %v217 = vld [vmem:[#allocation5 + $0x510] sm:$0xff]
    %v218 = vld [vmem:[#allocation5 + $0x518] sm:$0xff]
    %v219 = vld [vmem:[#allocation5 + $0x520] sm:$0xff]
    %v220 = vld [vmem:[#allocation5 + $0x528] sm:$0xff]
    %v221 = vld [vmem:[#allocation5 + $0x530] sm:$0xff]
    %v222 = vld [vmem:[#allocation5 + $0x538] sm:$0xff]
    %v223 = vld [vmem:[#allocation5 + $0x540] sm:$0xff]
    %v224 = vld [vmem:[#allocation5 + $0x548] sm:$0xff]
    %v225 = vld [vmem:[#allocation5 + $0x550] sm:$0xff]
    %v226 = vld [vmem:[#allocation5 + $0x558] sm:$0xff]
    %v227 = vld [vmem:[#allocation5 + $0x560] sm:$0xff]
    %v228 = vld [vmem:[#allocation5 + $0x568] sm:$0xff]
    %v229 = vld [vmem:[#allocation5 + $0x570] sm:$0xff]
    %v230 = vld [vmem:[#allocation5 + $0x578] sm:$0xff]
    %v231 = vld [vmem:[#allocation5 + $0x580] sm:$0xff]
    %v232 = vld [vmem:[#allocation5 + $0x588] sm:$0xff]
    %v233 = vld [vmem:[#allocation5 + $0x590] sm:$0xff]
    %v234 = vld [vmem:[#allocation5 + $0x598] sm:$0xff]
    %v235 = vld [vmem:[#allocation5 + $0x5a0] sm:$0xff]
    %v236 = vld [vmem:[#allocation5 + $0x5a8] sm:$0xff]
    %v237 = vld [vmem:[#allocation5 + $0x5b0] sm:$0xff]
    %v238 = vld [vmem:[#allocation5 + $0x5b8] sm:$0xff]
    %v239 = vld [vmem:[#allocation5 + $0x5c0] sm:$0xff]
    %v240 = vld [vmem:[#allocation5 + $0x5c8] sm:$0xff]
    %v241 = vld [vmem:[#allocation5 + $0x5d0] sm:$0xff]
    %v242 = vld [vmem:[#allocation5 + $0x5d8] sm:$0xff]
    %v243 = vld [vmem:[#allocation5 + $0x5e0] sm:$0xff]
    %v244 = vld [vmem:[#allocation5 + $0x5e8] sm:$0xff]
    %v245 = vld [vmem:[#allocation5 + $0x5f0] sm:$0xff]
    %v246 = vld [vmem:[#allocation5 + $0x5f8] sm:$0xff]
    %v247 = vld [vmem:[#allocation5 + $0x600] sm:$0xff]
    %v248 = vld [vmem:[#allocation5 + $0x608] sm:$0xff]
    %v249 = vld [vmem:[#allocation5 + $0x610] sm:$0xff]
    %v250 = vld [vmem:[#allocation5 + $0x618] sm:$0xff]
    %v251 = vld [vmem:[#allocation5 + $0x620] sm:$0xff]
    %v252 = vld [vmem:[#allocation5 + $0x628] sm:$0xff]
    %v253 = vld [vmem:[#allocation5 + $0x630] sm:$0xff]
    %v254 = vld [vmem:[#allocation5 + $0x638] sm:$0xff]
    %v255 = vld [vmem:[#allocation5 + $0x640] sm:$0xff]
    %v256 = vld [vmem:[#allocation5 + $0x648] sm:$0xff]
    %v257 = vld [vmem:[#allocation5 + $0x650] sm:$0xff]
    %v258 = vld [vmem:[#allocation5 + $0x658] sm:$0xff]
    %v259 = vld [vmem:[#allocation5 + $0x660] sm:$0xff]
    %v260 = vld [vmem:[#allocation5 + $0x668] sm:$0xff]
    %v261 = vld [vmem:[#allocation5 + $0x670] sm:$0xff]
    %v262 = vld [vmem:[#allocation5 + $0x678] sm:$0xff]
    %v263 = vld [vmem:[#allocation5 + $0x680] sm:$0xff]
    %v264 = vld [vmem:[#allocation5 + $0x688] sm:$0xff]
    %v265 = vld [vmem:[#allocation5 + $0x690] sm:$0xff]
    %v266 = vld [vmem:[#allocation5 + $0x698] sm:$0xff]
    %v267 = vld [vmem:[#allocation5 + $0x6a0] sm:$0xff]
    %v268 = vld [vmem:[#allocation5 + $0x6a8] sm:$0xff]
    %v269 = vld [vmem:[#allocation5 + $0x6b0] sm:$0xff]
    %v270 = vld [vmem:[#allocation5 + $0x6b8] sm:$0xff]
    %v271 = vld [vmem:[#allocation5 + $0x6c0] sm:$0xff]
    %v272 = vld [vmem:[#allocation5 + $0x6c8] sm:$0xff]
    %v273 = vld [vmem:[#allocation5 + $0x6d0] sm:$0xff]
    %v274 = vld [vmem:[#allocation5 + $0x6d8] sm:$0xff]
    %v275 = vld [vmem:[#allocation5 + $0x6e0] sm:$0xff]
    %v276 = vld [vmem:[#allocation5 + $0x6e8] sm:$0xff]
    %v277 = vld [vmem:[#allocation5 + $0x6f0] sm:$0xff]
    %v278 = vld [vmem:[#allocation5 + $0x6f8] sm:$0xff]
    %v279 = vld [vmem:[#allocation5 + $0x700] sm:$0xff]
    %v280 = vld [vmem:[#allocation5 + $0x708] sm:$0xff]
    %v281 = vld [vmem:[#allocation5 + $0x710] sm:$0xff]
    %v282 = vld [vmem:[#allocation5 + $0x718] sm:$0xff]
    %v283 = vld [vmem:[#allocation5 + $0x720] sm:$0xff]
    %v284 = vld [vmem:[#allocation5 + $0x728] sm:$0xff]
    %v285 = vld [vmem:[#allocation5 + $0x730] sm:$0xff]
    %v286 = vld [vmem:[#allocation5 + $0x738] sm:$0xff]
    %v287 = vld [vmem:[#allocation5 + $0x740] sm:$0xff]
    %v288 = vld [vmem:[#allocation5 + $0x748] sm:$0xff]
    %v289 = vld [vmem:[#allocation5 + $0x750] sm:$0xff]
    %v290 = vld [vmem:[#allocation5 + $0x758] sm:$0xff]
    %v291 = vld [vmem:[#allocation5 + $0x760] sm:$0xff]
    %v292 = vld [vmem:[#allocation5 + $0x768] sm:$0xff]
    %v293 = vld [vmem:[#allocation5 + $0x770] sm:$0xff]
    %v294 = vld [vmem:[#allocation5 + $0x778] sm:$0xff]
    %v295 = vld [vmem:[#allocation5 + $0x780] sm:$0xff]
    %v296 = vld [vmem:[#allocation5 + $0x788] sm:$0xff]
    %v297 = vld [vmem:[#allocation5 + $0x790] sm:$0xff]
    %v298 = vld [vmem:[#allocation5 + $0x798] sm:$0xff]
    %v299 = vld [vmem:[#allocation5 + $0x7a0] sm:$0xff]
    %v300 = vld [vmem:[#allocation5 + $0x7a8] sm:$0xff]
    %v301 = vld [vmem:[#allocation5 + $0x7b0] sm:$0xff]
    %v302 = vld [vmem:[#allocation5 + $0x7b8] sm:$0xff]
    %v303 = vld [vmem:[#allocation5 + $0x7c0] sm:$0xff]
    %v304 = vld [vmem:[#allocation5 + $0x7c8] sm:$0xff]
    %v305 = vld [vmem:[#allocation5 + $0x7d0] sm:$0xff]
    %v306 = vld [vmem:[#allocation5 + $0x7d8] sm:$0xff]
    %v307 = vld [vmem:[#allocation5 + $0x7e0] sm:$0xff]
    %v308 = vld [vmem:[#allocation5 + $0x7e8] sm:$0xff]
    %v309 = vld [vmem:[#allocation5 + $0x7f0] sm:$0xff]
    %v310 = vld [vmem:[#allocation5 + $0x7f8] sm:$0xff]
    %v311 = vld [vmem:[#allocation5 + $0x800] sm:$0xff]
    %v312 = vld [vmem:[#allocation5 + $0x808] sm:$0xff]
    %v313 = vld [vmem:[#allocation5 + $0x810] sm:$0xff]
    %v314 = vld [vmem:[#allocation5 + $0x818] sm:$0xff]
    %v315 = vld [vmem:[#allocation5 + $0x820] sm:$0xff]
    %v316 = vld [vmem:[#allocation5 + $0x828] sm:$0xff]
    %v317 = vld [vmem:[#allocation5 + $0x830] sm:$0xff]
    %v318 = vld [vmem:[#allocation5 + $0x838] sm:$0xff]
    %v319 = vld [vmem:[#allocation5 + $0x840] sm:$0xff]
    %v320 = vld [vmem:[#allocation5 + $0x848] sm:$0xff]
    %v321 = vld [vmem:[#allocation5 + $0x850] sm:$0xff]
    %v322 = vld [vmem:[#allocation5 + $0x858] sm:$0xff]
    %v323 = vld [vmem:[#allocation5 + $0x860] sm:$0xff]
    %v324 = vld [vmem:[#allocation5 + $0x868] sm:$0xff]
    %v325 = vld [vmem:[#allocation5 + $0x870] sm:$0xff]
    %v326 = vld [vmem:[#allocation5 + $0x878] sm:$0xff]
    %v327 = vld [vmem:[#allocation5 + $0x880] sm:$0xff]
    %v328 = vld [vmem:[#allocation5 + $0x888] sm:$0xff]
    %v329 = vld [vmem:[#allocation5 + $0x890] sm:$0xff]
    %v330 = vld [vmem:[#allocation5 + $0x898] sm:$0xff]
    %v331 = vld [vmem:[#allocation5 + $0x8a0] sm:$0xff]
    %v332 = vld [vmem:[#allocation5 + $0x8a8] sm:$0xff]
    %v333 = vld [vmem:[#allocation5 + $0x8b0] sm:$0xff]
    %v334 = vld [vmem:[#allocation5 + $0x8b8] sm:$0xff]
    %v335 = vld [vmem:[#allocation5 + $0x8c0] sm:$0xff]
    %v336 = vld [vmem:[#allocation5 + $0x8c8] sm:$0xff]
    %v337 = vld [vmem:[#allocation5 + $0x8d0] sm:$0xff]
    %v338 = vld [vmem:[#allocation5 + $0x8d8] sm:$0xff]
    %v339 = vld [vmem:[#allocation5 + $0x8e0] sm:$0xff]
    %v340 = vld [vmem:[#allocation5 + $0x8e8] sm:$0xff]
    %v341 = vld [vmem:[#allocation5 + $0x8f0] sm:$0xff]
    %v342 = vld [vmem:[#allocation5 + $0x8f8] sm:$0xff]
    %v343 = vld [vmem:[#allocation5 + $0x900] sm:$0xff]
    %v344 = vld [vmem:[#allocation5 + $0x908] sm:$0xff]
    %v345 = vld [vmem:[#allocation5 + $0x910] sm:$0xff]
    %v346 = vld [vmem:[#allocation5 + $0x918] sm:$0xff]
    %v347 = vld [vmem:[#allocation5 + $0x920] sm:$0xff]
    %v348 = vld [vmem:[#allocation5 + $0x928] sm:$0xff]
    %v349 = vld [vmem:[#allocation5 + $0x930] sm:$0xff]
    %v350 = vld [vmem:[#allocation5 + $0x938] sm:$0xff]
    %v351 = vld [vmem:[#allocation5 + $0x940] sm:$0xff]
    %v352 = vld [vmem:[#allocation5 + $0x948] sm:$0xff]
    %v353 = vld [vmem:[#allocation5 + $0x950] sm:$0xff]
    %v354 = vld [vmem:[#allocation5 + $0x958] sm:$0xff]
    %v355 = vld [vmem:[#allocation5 + $0x960] sm:$0xff]
    %v356 = vld [vmem:[#allocation5 + $0x968] sm:$0xff]
    %v357 = vld [vmem:[#allocation5 + $0x970] sm:$0xff]
    %v358 = vld [vmem:[#allocation5 + $0x978] sm:$0xff]
    %v359 = vld [vmem:[#allocation5 + $0x980] sm:$0xff]
    %v360 = vld [vmem:[#allocation5 + $0x988] sm:$0xff]
    %v361 = vld [vmem:[#allocation5 + $0x990] sm:$0xff]
    %v362 = vld [vmem:[#allocation5 + $0x998] sm:$0xff]
    %v363 = vld [vmem:[#allocation5 + $0x9a0] sm:$0xff]
    %v364 = vld [vmem:[#allocation5 + $0x9a8] sm:$0xff]
    %v365 = vld [vmem:[#allocation5 + $0x9b0] sm:$0xff]
    %v366 = vld [vmem:[#allocation5 + $0x9b8] sm:$0xff]
    %v367 = vld [vmem:[#allocation5 + $0x9c0] sm:$0xff]
    %v368 = vld [vmem:[#allocation5 + $0x9c8] sm:$0xff]
    %v369 = vld [vmem:[#allocation5 + $0x9d0] sm:$0xff]
    %v370 = vld [vmem:[#allocation5 + $0x9d8] sm:$0xff]
    %v371 = vld [vmem:[#allocation5 + $0x9e0] sm:$0xff]
    %v372 = vld [vmem:[#allocation5 + $0x9e8] sm:$0xff]
    %v373 = vld [vmem:[#allocation5 + $0x9f0] sm:$0xff]
    %v374 = vld [vmem:[#allocation5 + $0x9f8] sm:$0xff]
    %v375 = vld [vmem:[#allocation5 + $0xa00] sm:$0xff]
    %v376 = vld [vmem:[#allocation5 + $0xa08] sm:$0xff]
    %v377 = vld [vmem:[#allocation5 + $0xa10] sm:$0xff]
    %v378 = vld [vmem:[#allocation5 + $0xa18] sm:$0xff]
    %v379 = vld [vmem:[#allocation5 + $0xa20] sm:$0xff]
    %v380 = vld [vmem:[#allocation5 + $0xa28] sm:$0xff]
    %v381 = vld [vmem:[#allocation5 + $0xa30] sm:$0xff]
    %v382 = vld [vmem:[#allocation5 + $0xa38] sm:$0xff]
    %v383 = vld [vmem:[#allocation5 + $0xa40] sm:$0xff]
    %v384 = vld [vmem:[#allocation5 + $0xa48] sm:$0xff]
    %v385 = vld [vmem:[#allocation5 + $0xa50] sm:$0xff]
    %v386 = vld [vmem:[#allocation5 + $0xa58] sm:$0xff]
    %v387 = vld [vmem:[#allocation5 + $0xa60] sm:$0xff]
    %v388 = vld [vmem:[#allocation5 + $0xa68] sm:$0xff]
    %v389 = vld [vmem:[#allocation5 + $0xa70] sm:$0xff]
    %v390 = vld [vmem:[#allocation5 + $0xa78] sm:$0xff]
    %v391 = vld [vmem:[#allocation5 + $0xa80] sm:$0xff]
    %v392 = vld [vmem:[#allocation5 + $0xa88] sm:$0xff]
    %v393 = vld [vmem:[#allocation5 + $0xa90] sm:$0xff]
    %v394 = vld [vmem:[#allocation5 + $0xa98] sm:$0xff]
    %v395 = vld [vmem:[#allocation5 + $0xaa0] sm:$0xff]
    %v396 = vld [vmem:[#allocation5 + $0xaa8] sm:$0xff]
    %v397 = vld [vmem:[#allocation5 + $0xab0] sm:$0xff]
    %v398 = vld [vmem:[#allocation5 + $0xab8] sm:$0xff]
    %v399 = vld [vmem:[#allocation5 + $0xac0] sm:$0xff]
    %v400 = vld [vmem:[#allocation5 + $0xac8] sm:$0xff]
    %v401 = vld [vmem:[#allocation5 + $0xad0] sm:$0xff]
    %v402 = vld [vmem:[#allocation5 + $0xad8] sm:$0xff]
    %v403 = vld [vmem:[#allocation5 + $0xae0] sm:$0xff]
    %v404 = vld [vmem:[#allocation5 + $0xae8] sm:$0xff]
    %v405 = vld [vmem:[#allocation5 + $0xaf0] sm:$0xff]
    %v406 = vld [vmem:[#allocation5 + $0xaf8] sm:$0xff]
    %v407 = vld [vmem:[#allocation5 + $0xb00] sm:$0xff]
    %v408 = vld [vmem:[#allocation5 + $0xb08] sm:$0xff]
    %v409 = vld [vmem:[#allocation5 + $0xb10] sm:$0xff]
    %v410 = vld [vmem:[#allocation5 + $0xb18] sm:$0xff]
    %v411 = vld [vmem:[#allocation5 + $0xb20] sm:$0xff]
    %v412 = vld [vmem:[#allocation5 + $0xb28] sm:$0xff]
    %v413 = vld [vmem:[#allocation5 + $0xb30] sm:$0xff]
    %v414 = vld [vmem:[#allocation5 + $0xb38] sm:$0xff]
    %v415 = vld [vmem:[#allocation5 + $0xb40] sm:$0xff]
    %v416 = vld [vmem:[#allocation5 + $0xb48] sm:$0xff]
    %v417 = vld [vmem:[#allocation5 + $0xb50] sm:$0xff]
    %v418 = vld [vmem:[#allocation5 + $0xb58] sm:$0xff]
    %v419 = vld [vmem:[#allocation5 + $0xb60] sm:$0xff]
    %v420 = vld [vmem:[#allocation5 + $0xb68] sm:$0xff]
    %v421 = vld [vmem:[#allocation5 + $0xb70] sm:$0xff]
    %v422 = vld [vmem:[#allocation5 + $0xb78] sm:$0xff]
    %v423 = vld [vmem:[#allocation5 + $0xb80] sm:$0xff]
    %v424 = vld [vmem:[#allocation5 + $0xb88] sm:$0xff]
    %v425 = vld [vmem:[#allocation5 + $0xb90] sm:$0xff]
    %v426 = vld [vmem:[#allocation5 + $0xb98] sm:$0xff]
    %v427 = vld [vmem:[#allocation5 + $0xba0] sm:$0xff]
    %v428 = vld [vmem:[#allocation5 + $0xba8] sm:$0xff]
    %v429 = vld [vmem:[#allocation5 + $0xbb0] sm:$0xff]
    %v430 = vld [vmem:[#allocation5 + $0xbb8] sm:$0xff]
    %v431 = vld [vmem:[#allocation5 + $0xbc0] sm:$0xff]
    %v432 = vld [vmem:[#allocation5 + $0xbc8] sm:$0xff]
    %v433 = vld [vmem:[#allocation5 + $0xbd0] sm:$0xff]
    %v434 = vld [vmem:[#allocation5 + $0xbd8] sm:$0xff]
    %v435 = vld [vmem:[#allocation5 + $0xbe0] sm:$0xff]
    %v436 = vld [vmem:[#allocation5 + $0xbe8] sm:$0xff]
    %v437 = vld [vmem:[#allocation5 + $0xbf0] sm:$0xff]
    %v438 = vld [vmem:[#allocation5 + $0xbf8] sm:$0xff]
    %v439 = vld [vmem:[#allocation7] sm:$0xff]
    %v441 = vlaneseq
    %v442 = vshrl.u32 %v441, 7
    %v443 = vsub.s32 0, %v442
    %v444 = vrot.slane %v439, %v443
    %v445 = vlaneseq
    %v446 = vshrl.u32 %v445, 7
    %v447 = vsub.s32 1, %v446
    %v448 = vrot.slane %v439, %v447
    %v449 = vlaneseq
    %v450 = vshrl.u32 %v449, 7
    %v451 = vsub.s32 2, %v450
    %v452 = vrot.slane %v439, %v451
    %v453 = vlaneseq
    %v454 = vshrl.u32 %v453, 7
    %v455 = vsub.s32 3, %v454
    %v456 = vrot.slane %v439, %v455
    %v457 = vlaneseq
    %v458 = vshrl.u32 %v457, 7
    %v459 = vsub.s32 4, %v458
    %v460 = vrot.slane %v439, %v459
    %v461 = vlaneseq
    %v462 = vshrl.u32 %v461, 7
    %v463 = vsub.s32 5, %v462
    %v464 = vrot.slane %v439, %v463
    %v465 = vlaneseq
    %v466 = vshrl.u32 %v465, 7
    %v467 = vsub.s32 6, %v466
    %v468 = vrot.slane %v439, %v467
    %v469 = vlaneseq
    %v470 = vshrl.u32 %v469, 7
    %v471 = vsub.s32 7, %v470
    %v472 = vrot.slane %v439, %v471
    %v484 = vunpack.c.l.b16 %v52
    %v485 = vunpack.c.h.b16 %v52
    %v486 = vunpack.c.l.b16 %v53
    %v487 = vunpack.c.h.b16 %v53
    %v488 = vunpack.c.l.b16 %v54
    %v489 = vunpack.c.h.b16 %v54
    %v490 = vpack.c.b16 %v484, %v484
    %v491 = vpack.c.b16 %v485, %v485
    %v492 = vpack.c.b16 %v486, %v486
    %v493 = vpack.c.b16 %v487, %v487
    %v494 = vpack.c.b16 %v488, %v488
    %v495 = vpack.c.b16 %v489, %v489
    %v886 = vunpack.c.l.b16 %v55
    %v887 = vunpack.c.h.b16 %v55
    %v888 = vunpack.c.l.b16 %v56
    %v889 = vunpack.c.h.b16 %v56
    %v890 = vunpack.c.l.b16 %v57
    %v891 = vunpack.c.h.b16 %v57
    %v892 = vunpack.c.l.b16 %v58
    %v893 = vunpack.c.h.b16 %v58
    %v894 = vunpack.c.l.b16 %v59
    %v895 = vunpack.c.h.b16 %v59
    %v896 = vunpack.c.l.b16 %v60
    %v897 = vunpack.c.h.b16 %v60
    %v898 = vunpack.c.l.b16 %v61
    %v899 = vunpack.c.h.b16 %v61
    %v900 = vunpack.c.l.b16 %v62
    %v901 = vunpack.c.h.b16 %v62
    %v902 = vunpack.c.l.b16 %v63
    %v903 = vunpack.c.h.b16 %v63
    %v904 = vunpack.c.l.b16 %v64
    %v905 = vunpack.c.h.b16 %v64
    %v906 = vunpack.c.l.b16 %v65
    %v907 = vunpack.c.h.b16 %v65
    %v908 = vunpack.c.l.b16 %v66
    %v909 = vunpack.c.h.b16 %v66
    %v910 = vunpack.c.l.b16 %v67
    %v911 = vunpack.c.h.b16 %v67
    %v912 = vunpack.c.l.b16 %v68
    %v913 = vunpack.c.h.b16 %v68
    %v914 = vunpack.c.l.b16 %v69
    %v915 = vunpack.c.h.b16 %v69
    %v916 = vunpack.c.l.b16 %v70
    %v917 = vunpack.c.h.b16 %v70
    %v918 = vunpack.c.l.b16 %v71
    %v919 = vunpack.c.h.b16 %v71
    %v920 = vunpack.c.l.b16 %v72
    %v921 = vunpack.c.h.b16 %v72
    %v922 = vunpack.c.l.b16 %v73
    %v923 = vunpack.c.h.b16 %v73
    %v924 = vunpack.c.l.b16 %v74
    %v925 = vunpack.c.h.b16 %v74
    %v926 = vunpack.c.l.b16 %v75
    %v927 = vunpack.c.h.b16 %v75
    %v928 = vunpack.c.l.b16 %v76
    %v929 = vunpack.c.h.b16 %v76
    %v930 = vunpack.c.l.b16 %v77
    %v931 = vunpack.c.h.b16 %v77
    %v932 = vunpack.c.l.b16 %v78
    %v933 = vunpack.c.h.b16 %v78
    %v934 = vunpack.c.l.b16 %v79
    %v935 = vunpack.c.h.b16 %v79
    %v936 = vunpack.c.l.b16 %v80
    %v937 = vunpack.c.h.b16 %v80
    %v938 = vunpack.c.l.b16 %v81
    %v939 = vunpack.c.h.b16 %v81
    %v940 = vunpack.c.l.b16 %v82
    %v941 = vunpack.c.h.b16 %v82
    %v942 = vunpack.c.l.b16 %v83
    %v943 = vunpack.c.h.b16 %v83
    %v944 = vunpack.c.l.b16 %v84
    %v945 = vunpack.c.h.b16 %v84
    %v946 = vunpack.c.l.b16 %v85
    %v947 = vunpack.c.h.b16 %v85
    %v948 = vunpack.c.l.b16 %v86
    %v949 = vunpack.c.h.b16 %v86
    %v950 = vunpack.c.l.b16 %v87
    %v951 = vunpack.c.h.b16 %v87
    %v952 = vunpack.c.l.b16 %v88
    %v953 = vunpack.c.h.b16 %v88
    %v954 = vunpack.c.l.b16 %v89
    %v955 = vunpack.c.h.b16 %v89
    %v956 = vunpack.c.l.b16 %v90
    %v957 = vunpack.c.h.b16 %v90
    %v958 = vunpack.c.l.b16 %v91
    %v959 = vunpack.c.h.b16 %v91
    %v960 = vunpack.c.l.b16 %v92
    %v961 = vunpack.c.h.b16 %v92
    %v962 = vunpack.c.l.b16 %v93
    %v963 = vunpack.c.h.b16 %v93
    %v964 = vunpack.c.l.b16 %v94
    %v965 = vunpack.c.h.b16 %v94
    %v966 = vunpack.c.l.b16 %v95
    %v967 = vunpack.c.h.b16 %v95
    %v968 = vunpack.c.l.b16 %v96
    %v969 = vunpack.c.h.b16 %v96
    %v970 = vunpack.c.l.b16 %v97
    %v971 = vunpack.c.h.b16 %v97
    %v972 = vunpack.c.l.b16 %v98
    %v973 = vunpack.c.h.b16 %v98
    %v974 = vunpack.c.l.b16 %v99
    %v975 = vunpack.c.h.b16 %v99
    %v976 = vunpack.c.l.b16 %v100
    %v977 = vunpack.c.h.b16 %v100
    %v978 = vunpack.c.l.b16 %v101
    %v979 = vunpack.c.h.b16 %v101
    %v980 = vunpack.c.l.b16 %v102
    %v981 = vunpack.c.h.b16 %v102
    %v982 = vunpack.c.l.b16 %v103
    %v983 = vunpack.c.h.b16 %v103
    %v984 = vunpack.c.l.b16 %v104
    %v985 = vunpack.c.h.b16 %v104
    %v986 = vunpack.c.l.b16 %v105
    %v987 = vunpack.c.h.b16 %v105
    %v988 = vunpack.c.l.b16 %v106
    %v989 = vunpack.c.h.b16 %v106
    %v990 = vunpack.c.l.b16 %v107
    %v991 = vunpack.c.h.b16 %v107
    %v992 = vunpack.c.l.b16 %v108
    %v993 = vunpack.c.h.b16 %v108
    %v994 = vunpack.c.l.b16 %v109
    %v995 = vunpack.c.h.b16 %v109
    %v996 = vunpack.c.l.b16 %v110
    %v997 = vunpack.c.h.b16 %v110
    %v998 = vunpack.c.l.b16 %v111
    %v999 = vunpack.c.h.b16 %v111
    %v1000 = vunpack.c.l.b16 %v112
    %v1001 = vunpack.c.h.b16 %v112
    %v1002 = vunpack.c.l.b16 %v113
    %v1003 = vunpack.c.h.b16 %v113
    %v1004 = vunpack.c.l.b16 %v114
    %v1005 = vunpack.c.h.b16 %v114
    %v1006 = vunpack.c.l.b16 %v115
    %v1007 = vunpack.c.h.b16 %v115
    %v1008 = vunpack.c.l.b16 %v116
    %v1009 = vunpack.c.h.b16 %v116
    %v1010 = vunpack.c.l.b16 %v117
    %v1011 = vunpack.c.h.b16 %v117
    %v1012 = vunpack.c.l.b16 %v118
    %v1013 = vunpack.c.h.b16 %v118
    %v1014 = vunpack.c.l.b16 %v119
    %v1015 = vunpack.c.h.b16 %v119
    %v1016 = vunpack.c.l.b16 %v120
    %v1017 = vunpack.c.h.b16 %v120
    %v1018 = vunpack.c.l.b16 %v121
    %v1019 = vunpack.c.h.b16 %v121
    %v1020 = vunpack.c.l.b16 %v122
    %v1021 = vunpack.c.h.b16 %v122
    %v1022 = vunpack.c.l.b16 %v123
    %v1023 = vunpack.c.h.b16 %v123
    %v1024 = vunpack.c.l.b16 %v124
    %v1025 = vunpack.c.h.b16 %v124
    %v1026 = vunpack.c.l.b16 %v125
    %v1027 = vunpack.c.h.b16 %v125
    %v1028 = vunpack.c.l.b16 %v126
    %v1029 = vunpack.c.h.b16 %v126
    %v1030 = vunpack.c.l.b16 %v127
    %v1031 = vunpack.c.h.b16 %v127
    %v1032 = vunpack.c.l.b16 %v128
    %v1033 = vunpack.c.h.b16 %v128
    %v1034 = vunpack.c.l.b16 %v129
    %v1035 = vunpack.c.h.b16 %v129
    %v1036 = vunpack.c.l.b16 %v130
    %v1037 = vunpack.c.h.b16 %v130
    %v1038 = vunpack.c.l.b16 %v131
    %v1039 = vunpack.c.h.b16 %v131
    %v1040 = vunpack.c.l.b16 %v132
    %v1041 = vunpack.c.h.b16 %v132
    %v1042 = vunpack.c.l.b16 %v133
    %v1043 = vunpack.c.h.b16 %v133
    %v1044 = vunpack.c.l.b16 %v134
    %v1045 = vunpack.c.h.b16 %v134
    %v1046 = vunpack.c.l.b16 %v135
    %v1047 = vunpack.c.h.b16 %v135
    %v1048 = vunpack.c.l.b16 %v136
    %v1049 = vunpack.c.h.b16 %v136
    %v1050 = vunpack.c.l.b16 %v137
    %v1051 = vunpack.c.h.b16 %v137
    %v1052 = vunpack.c.l.b16 %v138
    %v1053 = vunpack.c.h.b16 %v138
    %v1054 = vunpack.c.l.b16 %v139
    %v1055 = vunpack.c.h.b16 %v139
    %v1056 = vunpack.c.l.b16 %v140
    %v1057 = vunpack.c.h.b16 %v140
    %v1058 = vunpack.c.l.b16 %v141
    %v1059 = vunpack.c.h.b16 %v141
    %v1060 = vunpack.c.l.b16 %v142
    %v1061 = vunpack.c.h.b16 %v142
    %v1062 = vunpack.c.l.b16 %v143
    %v1063 = vunpack.c.h.b16 %v143
    %v1064 = vunpack.c.l.b16 %v144
    %v1065 = vunpack.c.h.b16 %v144
    %v1066 = vunpack.c.l.b16 %v145
    %v1067 = vunpack.c.h.b16 %v145
    %v1068 = vunpack.c.l.b16 %v146
    %v1069 = vunpack.c.h.b16 %v146
    %v1070 = vunpack.c.l.b16 %v147
    %v1071 = vunpack.c.h.b16 %v147
    %v1072 = vunpack.c.l.b16 %v148
    %v1073 = vunpack.c.h.b16 %v148
    %v1074 = vunpack.c.l.b16 %v149
    %v1075 = vunpack.c.h.b16 %v149
    %v1076 = vunpack.c.l.b16 %v150
    %v1077 = vunpack.c.h.b16 %v150
    %v1078 = vunpack.c.l.b16 %v151
    %v1079 = vunpack.c.h.b16 %v151
    %v1080 = vunpack.c.l.b16 %v152
    %v1081 = vunpack.c.h.b16 %v152
    %v1082 = vunpack.c.l.b16 %v153
    %v1083 = vunpack.c.h.b16 %v153
    %v1084 = vunpack.c.l.b16 %v154
    %v1085 = vunpack.c.h.b16 %v154
    %v1086 = vunpack.c.l.b16 %v155
    %v1087 = vunpack.c.h.b16 %v155
    %v1088 = vunpack.c.l.b16 %v156
    %v1089 = vunpack.c.h.b16 %v156
    %v1090 = vunpack.c.l.b16 %v157
    %v1091 = vunpack.c.h.b16 %v157
    %v1092 = vunpack.c.l.b16 %v158
    %v1093 = vunpack.c.h.b16 %v158
    %v1094 = vunpack.c.l.b16 %v159
    %v1095 = vunpack.c.h.b16 %v159
    %v1096 = vunpack.c.l.b16 %v160
    %v1097 = vunpack.c.h.b16 %v160
    %v1098 = vunpack.c.l.b16 %v161
    %v1099 = vunpack.c.h.b16 %v161
    %v1100 = vunpack.c.l.b16 %v162
    %v1101 = vunpack.c.h.b16 %v162
    %v1102 = vunpack.c.l.b16 %v163
    %v1103 = vunpack.c.h.b16 %v163
    %v1104 = vunpack.c.l.b16 %v164
    %v1105 = vunpack.c.h.b16 %v164
    %v1106 = vunpack.c.l.b16 %v165
    %v1107 = vunpack.c.h.b16 %v165
    %v1108 = vunpack.c.l.b16 %v166
    %v1109 = vunpack.c.h.b16 %v166
    %v1110 = vunpack.c.l.b16 %v167
    %v1111 = vunpack.c.h.b16 %v167
    %v1112 = vunpack.c.l.b16 %v168
    %v1113 = vunpack.c.h.b16 %v168
    %v1114 = vunpack.c.l.b16 %v169
    %v1115 = vunpack.c.h.b16 %v169
    %v1116 = vunpack.c.l.b16 %v170
    %v1117 = vunpack.c.h.b16 %v170
    %v1118 = vunpack.c.l.b16 %v171
    %v1119 = vunpack.c.h.b16 %v171
    %v1120 = vunpack.c.l.b16 %v172
    %v1121 = vunpack.c.h.b16 %v172
    %v1122 = vunpack.c.l.b16 %v173
    %v1123 = vunpack.c.h.b16 %v173
    %v1124 = vunpack.c.l.b16 %v174
    %v1125 = vunpack.c.h.b16 %v174
    %v1126 = vunpack.c.l.b16 %v175
    %v1127 = vunpack.c.h.b16 %v175
    %v1128 = vunpack.c.l.b16 %v176
    %v1129 = vunpack.c.h.b16 %v176
    %v1130 = vunpack.c.l.b16 %v177
    %v1131 = vunpack.c.h.b16 %v177
    %v1132 = vunpack.c.l.b16 %v178
    %v1133 = vunpack.c.h.b16 %v178
    %v1134 = vunpack.c.l.b16 %v179
    %v1135 = vunpack.c.h.b16 %v179
    %v1136 = vunpack.c.l.b16 %v180
    %v1137 = vunpack.c.h.b16 %v180
    %v1138 = vunpack.c.l.b16 %v181
    %v1139 = vunpack.c.h.b16 %v181
    %v1140 = vunpack.c.l.b16 %v182
    %v1141 = vunpack.c.h.b16 %v182
    %v1142 = vunpack.c.l.b16 %v183
    %v1143 = vunpack.c.h.b16 %v183
    %v1144 = vunpack.c.l.b16 %v184
    %v1145 = vunpack.c.h.b16 %v184
    %v1146 = vunpack.c.l.b16 %v185
    %v1147 = vunpack.c.h.b16 %v185
    %v1148 = vunpack.c.l.b16 %v186
    %v1149 = vunpack.c.h.b16 %v186
    %v1150 = vunpack.c.l.b16 %v187
    %v1151 = vunpack.c.h.b16 %v187
    %v1152 = vunpack.c.l.b16 %v188
    %v1153 = vunpack.c.h.b16 %v188
    %v1154 = vunpack.c.l.b16 %v189
    %v1155 = vunpack.c.h.b16 %v189
    %v1156 = vunpack.c.l.b16 %v190
    %v1157 = vunpack.c.h.b16 %v190
    %v1158 = vunpack.c.l.b16 %v191
    %v1159 = vunpack.c.h.b16 %v191
    %v1160 = vunpack.c.l.b16 %v192
    %v1161 = vunpack.c.h.b16 %v192
    %v1162 = vunpack.c.l.b16 %v193
    %v1163 = vunpack.c.h.b16 %v193
    %v1164 = vunpack.c.l.b16 %v194
    %v1165 = vunpack.c.h.b16 %v194
    %v1166 = vunpack.c.l.b16 %v195
    %v1167 = vunpack.c.h.b16 %v195
    %v1168 = vunpack.c.l.b16 %v196
    %v1169 = vunpack.c.h.b16 %v196
    %v1170 = vunpack.c.l.b16 %v197
    %v1171 = vunpack.c.h.b16 %v197
    %v1172 = vunpack.c.l.b16 %v198
    %v1173 = vunpack.c.h.b16 %v198
    %v1174 = vunpack.c.l.b16 %v199
    %v1175 = vunpack.c.h.b16 %v199
    %v1176 = vunpack.c.l.b16 %v200
    %v1177 = vunpack.c.h.b16 %v200
    %v1178 = vunpack.c.l.b16 %v201
    %v1179 = vunpack.c.h.b16 %v201
    %v1180 = vunpack.c.l.b16 %v202
    %v1181 = vunpack.c.h.b16 %v202
    %v1182 = vunpack.c.l.b16 %v203
    %v1183 = vunpack.c.h.b16 %v203
    %v1184 = vunpack.c.l.b16 %v204
    %v1185 = vunpack.c.h.b16 %v204
    %v1186 = vunpack.c.l.b16 %v205
    %v1187 = vunpack.c.h.b16 %v205
    %v1188 = vunpack.c.l.b16 %v206
    %v1189 = vunpack.c.h.b16 %v206
    %v1190 = vunpack.c.l.b16 %v207
    %v1191 = vunpack.c.h.b16 %v207
    %v1192 = vunpack.c.l.b16 %v208
    %v1193 = vunpack.c.h.b16 %v208
    %v1194 = vunpack.c.l.b16 %v209
    %v1195 = vunpack.c.h.b16 %v209
    %v1196 = vunpack.c.l.b16 %v210
    %v1197 = vunpack.c.h.b16 %v210
    %v1198 = vunpack.c.l.b16 %v211
    %v1199 = vunpack.c.h.b16 %v211
    %v1200 = vunpack.c.l.b16 %v212
    %v1201 = vunpack.c.h.b16 %v212
    %v1202 = vunpack.c.l.b16 %v213
    %v1203 = vunpack.c.h.b16 %v213
    %v1204 = vunpack.c.l.b16 %v214
    %v1205 = vunpack.c.h.b16 %v214
    %v1206 = vunpack.c.l.b16 %v215
    %v1207 = vunpack.c.h.b16 %v215
    %v1208 = vunpack.c.l.b16 %v216
    %v1209 = vunpack.c.h.b16 %v216
    %v1210 = vunpack.c.l.b16 %v217
    %v1211 = vunpack.c.h.b16 %v217
    %v1212 = vunpack.c.l.b16 %v218
    %v1213 = vunpack.c.h.b16 %v218
    %v1214 = vunpack.c.l.b16 %v219
    %v1215 = vunpack.c.h.b16 %v219
    %v1216 = vunpack.c.l.b16 %v220
    %v1217 = vunpack.c.h.b16 %v220
    %v1218 = vunpack.c.l.b16 %v221
    %v1219 = vunpack.c.h.b16 %v221
    %v1220 = vunpack.c.l.b16 %v222
    %v1221 = vunpack.c.h.b16 %v222
    %v1222 = vunpack.c.l.b16 %v223
    %v1223 = vunpack.c.h.b16 %v223
    %v1224 = vunpack.c.l.b16 %v224
    %v1225 = vunpack.c.h.b16 %v224
    %v1226 = vunpack.c.l.b16 %v225
    %v1227 = vunpack.c.h.b16 %v225
    %v1228 = vunpack.c.l.b16 %v226
    %v1229 = vunpack.c.h.b16 %v226
    %v1230 = vunpack.c.l.b16 %v227
    %v1231 = vunpack.c.h.b16 %v227
    %v1232 = vunpack.c.l.b16 %v228
    %v1233 = vunpack.c.h.b16 %v228
    %v1234 = vunpack.c.l.b16 %v229
    %v1235 = vunpack.c.h.b16 %v229
    %v1236 = vunpack.c.l.b16 %v230
    %v1237 = vunpack.c.h.b16 %v230
    %v1238 = vunpack.c.l.b16 %v231
    %v1239 = vunpack.c.h.b16 %v231
    %v1240 = vunpack.c.l.b16 %v232
    %v1241 = vunpack.c.h.b16 %v232
    %v1242 = vunpack.c.l.b16 %v233
    %v1243 = vunpack.c.h.b16 %v233
    %v1244 = vunpack.c.l.b16 %v234
    %v1245 = vunpack.c.h.b16 %v234
    %v1246 = vunpack.c.l.b16 %v235
    %v1247 = vunpack.c.h.b16 %v235
    %v1248 = vunpack.c.l.b16 %v236
    %v1249 = vunpack.c.h.b16 %v236
    %v1250 = vunpack.c.l.b16 %v237
    %v1251 = vunpack.c.h.b16 %v237
    %v1252 = vunpack.c.l.b16 %v238
    %v1253 = vunpack.c.h.b16 %v238
    %v1254 = vunpack.c.l.b16 %v239
    %v1255 = vunpack.c.h.b16 %v239
    %v1256 = vunpack.c.l.b16 %v240
    %v1257 = vunpack.c.h.b16 %v240
    %v1258 = vunpack.c.l.b16 %v241
    %v1259 = vunpack.c.h.b16 %v241
    %v1260 = vunpack.c.l.b16 %v242
    %v1261 = vunpack.c.h.b16 %v242
    %v1262 = vunpack.c.l.b16 %v243
    %v1263 = vunpack.c.h.b16 %v243
    %v1264 = vunpack.c.l.b16 %v244
    %v1265 = vunpack.c.h.b16 %v244
    %v1266 = vunpack.c.l.b16 %v245
    %v1267 = vunpack.c.h.b16 %v245
    %v1268 = vunpack.c.l.b16 %v246
    %v1269 = vunpack.c.h.b16 %v246
    %v1270 = vunpack.c.l.b16 %v247
    %v1271 = vunpack.c.h.b16 %v247
    %v1272 = vunpack.c.l.b16 %v248
    %v1273 = vunpack.c.h.b16 %v248
    %v1274 = vunpack.c.l.b16 %v249
    %v1275 = vunpack.c.h.b16 %v249
    %v1276 = vunpack.c.l.b16 %v250
    %v1277 = vunpack.c.h.b16 %v250
    %v1278 = vunpack.c.l.b16 %v251
    %v1279 = vunpack.c.h.b16 %v251
    %v1280 = vunpack.c.l.b16 %v252
    %v1281 = vunpack.c.h.b16 %v252
    %v1282 = vunpack.c.l.b16 %v253
    %v1283 = vunpack.c.h.b16 %v253
    %v1284 = vunpack.c.l.b16 %v254
    %v1285 = vunpack.c.h.b16 %v254
    %v1286 = vunpack.c.l.b16 %v255
    %v1287 = vunpack.c.h.b16 %v255
    %v1288 = vunpack.c.l.b16 %v256
    %v1289 = vunpack.c.h.b16 %v256
    %v1290 = vunpack.c.l.b16 %v257
    %v1291 = vunpack.c.h.b16 %v257
    %v1292 = vunpack.c.l.b16 %v258
    %v1293 = vunpack.c.h.b16 %v258
    %v1294 = vunpack.c.l.b16 %v259
    %v1295 = vunpack.c.h.b16 %v259
    %v1296 = vunpack.c.l.b16 %v260
    %v1297 = vunpack.c.h.b16 %v260
    %v1298 = vunpack.c.l.b16 %v261
    %v1299 = vunpack.c.h.b16 %v261
    %v1300 = vunpack.c.l.b16 %v262
    %v1301 = vunpack.c.h.b16 %v262
    %v1302 = vunpack.c.l.b16 %v263
    %v1303 = vunpack.c.h.b16 %v263
    %v1304 = vunpack.c.l.b16 %v264
    %v1305 = vunpack.c.h.b16 %v264
    %v1306 = vunpack.c.l.b16 %v265
    %v1307 = vunpack.c.h.b16 %v265
    %v1308 = vunpack.c.l.b16 %v266
    %v1309 = vunpack.c.h.b16 %v266
    %v1310 = vunpack.c.l.b16 %v267
    %v1311 = vunpack.c.h.b16 %v267
    %v1312 = vunpack.c.l.b16 %v268
    %v1313 = vunpack.c.h.b16 %v268
    %v1314 = vunpack.c.l.b16 %v269
    %v1315 = vunpack.c.h.b16 %v269
    %v1316 = vunpack.c.l.b16 %v270
    %v1317 = vunpack.c.h.b16 %v270
    %v1318 = vunpack.c.l.b16 %v271
    %v1319 = vunpack.c.h.b16 %v271
    %v1320 = vunpack.c.l.b16 %v272
    %v1321 = vunpack.c.h.b16 %v272
    %v1322 = vunpack.c.l.b16 %v273
    %v1323 = vunpack.c.h.b16 %v273
    %v1324 = vunpack.c.l.b16 %v274
    %v1325 = vunpack.c.h.b16 %v274
    %v1326 = vunpack.c.l.b16 %v275
    %v1327 = vunpack.c.h.b16 %v275
    %v1328 = vunpack.c.l.b16 %v276
    %v1329 = vunpack.c.h.b16 %v276
    %v1330 = vunpack.c.l.b16 %v277
    %v1331 = vunpack.c.h.b16 %v277
    %v1332 = vunpack.c.l.b16 %v278
    %v1333 = vunpack.c.h.b16 %v278
    %v1334 = vunpack.c.l.b16 %v279
    %v1335 = vunpack.c.h.b16 %v279
    %v1336 = vunpack.c.l.b16 %v280
    %v1337 = vunpack.c.h.b16 %v280
    %v1338 = vunpack.c.l.b16 %v281
    %v1339 = vunpack.c.h.b16 %v281
    %v1340 = vunpack.c.l.b16 %v282
    %v1341 = vunpack.c.h.b16 %v282
    %v1342 = vunpack.c.l.b16 %v283
    %v1343 = vunpack.c.h.b16 %v283
    %v1344 = vunpack.c.l.b16 %v284
    %v1345 = vunpack.c.h.b16 %v284
    %v1346 = vunpack.c.l.b16 %v285
    %v1347 = vunpack.c.h.b16 %v285
    %v1348 = vunpack.c.l.b16 %v286
    %v1349 = vunpack.c.h.b16 %v286
    %v1350 = vunpack.c.l.b16 %v287
    %v1351 = vunpack.c.h.b16 %v287
    %v1352 = vunpack.c.l.b16 %v288
    %v1353 = vunpack.c.h.b16 %v288
    %v1354 = vunpack.c.l.b16 %v289
    %v1355 = vunpack.c.h.b16 %v289
    %v1356 = vunpack.c.l.b16 %v290
    %v1357 = vunpack.c.h.b16 %v290
    %v1358 = vunpack.c.l.b16 %v291
    %v1359 = vunpack.c.h.b16 %v291
    %v1360 = vunpack.c.l.b16 %v292
    %v1361 = vunpack.c.h.b16 %v292
    %v1362 = vunpack.c.l.b16 %v293
    %v1363 = vunpack.c.h.b16 %v293
    %v1364 = vunpack.c.l.b16 %v294
    %v1365 = vunpack.c.h.b16 %v294
    %v1366 = vunpack.c.l.b16 %v295
    %v1367 = vunpack.c.h.b16 %v295
    %v1368 = vunpack.c.l.b16 %v296
    %v1369 = vunpack.c.h.b16 %v296
    %v1370 = vunpack.c.l.b16 %v297
    %v1371 = vunpack.c.h.b16 %v297
    %v1372 = vunpack.c.l.b16 %v298
    %v1373 = vunpack.c.h.b16 %v298
    %v1374 = vunpack.c.l.b16 %v299
    %v1375 = vunpack.c.h.b16 %v299
    %v1376 = vunpack.c.l.b16 %v300
    %v1377 = vunpack.c.h.b16 %v300
    %v1378 = vunpack.c.l.b16 %v301
    %v1379 = vunpack.c.h.b16 %v301
    %v1380 = vunpack.c.l.b16 %v302
    %v1381 = vunpack.c.h.b16 %v302
    %v1382 = vunpack.c.l.b16 %v303
    %v1383 = vunpack.c.h.b16 %v303
    %v1384 = vunpack.c.l.b16 %v304
    %v1385 = vunpack.c.h.b16 %v304
    %v1386 = vunpack.c.l.b16 %v305
    %v1387 = vunpack.c.h.b16 %v305
    %v1388 = vunpack.c.l.b16 %v306
    %v1389 = vunpack.c.h.b16 %v306
    %v1390 = vunpack.c.l.b16 %v307
    %v1391 = vunpack.c.h.b16 %v307
    %v1392 = vunpack.c.l.b16 %v308
    %v1393 = vunpack.c.h.b16 %v308
    %v1394 = vunpack.c.l.b16 %v309
    %v1395 = vunpack.c.h.b16 %v309
    %v1396 = vunpack.c.l.b16 %v310
    %v1397 = vunpack.c.h.b16 %v310
    %v1398 = vunpack.c.l.b16 %v311
    %v1399 = vunpack.c.h.b16 %v311
    %v1400 = vunpack.c.l.b16 %v312
    %v1401 = vunpack.c.h.b16 %v312
    %v1402 = vunpack.c.l.b16 %v313
    %v1403 = vunpack.c.h.b16 %v313
    %v1404 = vunpack.c.l.b16 %v314
    %v1405 = vunpack.c.h.b16 %v314
    %v1406 = vunpack.c.l.b16 %v315
    %v1407 = vunpack.c.h.b16 %v315
    %v1408 = vunpack.c.l.b16 %v316
    %v1409 = vunpack.c.h.b16 %v316
    %v1410 = vunpack.c.l.b16 %v317
    %v1411 = vunpack.c.h.b16 %v317
    %v1412 = vunpack.c.l.b16 %v318
    %v1413 = vunpack.c.h.b16 %v318
    %v1414 = vunpack.c.l.b16 %v319
    %v1415 = vunpack.c.h.b16 %v319
    %v1416 = vunpack.c.l.b16 %v320
    %v1417 = vunpack.c.h.b16 %v320
    %v1418 = vunpack.c.l.b16 %v321
    %v1419 = vunpack.c.h.b16 %v321
    %v1420 = vunpack.c.l.b16 %v322
    %v1421 = vunpack.c.h.b16 %v322
    %v1422 = vunpack.c.l.b16 %v323
    %v1423 = vunpack.c.h.b16 %v323
    %v1424 = vunpack.c.l.b16 %v324
    %v1425 = vunpack.c.h.b16 %v324
    %v1426 = vunpack.c.l.b16 %v325
    %v1427 = vunpack.c.h.b16 %v325
    %v1428 = vunpack.c.l.b16 %v326
    %v1429 = vunpack.c.h.b16 %v326
    %v1430 = vunpack.c.l.b16 %v327
    %v1431 = vunpack.c.h.b16 %v327
    %v1432 = vunpack.c.l.b16 %v328
    %v1433 = vunpack.c.h.b16 %v328
    %v1434 = vunpack.c.l.b16 %v329
    %v1435 = vunpack.c.h.b16 %v329
    %v1436 = vunpack.c.l.b16 %v330
    %v1437 = vunpack.c.h.b16 %v330
    %v1438 = vunpack.c.l.b16 %v331
    %v1439 = vunpack.c.h.b16 %v331
    %v1440 = vunpack.c.l.b16 %v332
    %v1441 = vunpack.c.h.b16 %v332
    %v1442 = vunpack.c.l.b16 %v333
    %v1443 = vunpack.c.h.b16 %v333
    %v1444 = vunpack.c.l.b16 %v334
    %v1445 = vunpack.c.h.b16 %v334
    %v1446 = vunpack.c.l.b16 %v335
    %v1447 = vunpack.c.h.b16 %v335
    %v1448 = vunpack.c.l.b16 %v336
    %v1449 = vunpack.c.h.b16 %v336
    %v1450 = vunpack.c.l.b16 %v337
    %v1451 = vunpack.c.h.b16 %v337
    %v1452 = vunpack.c.l.b16 %v338
    %v1453 = vunpack.c.h.b16 %v338
    %v1454 = vunpack.c.l.b16 %v339
    %v1455 = vunpack.c.h.b16 %v339
    %v1456 = vunpack.c.l.b16 %v340
    %v1457 = vunpack.c.h.b16 %v340
    %v1458 = vunpack.c.l.b16 %v341
    %v1459 = vunpack.c.h.b16 %v341
    %v1460 = vunpack.c.l.b16 %v342
    %v1461 = vunpack.c.h.b16 %v342
    %v1462 = vunpack.c.l.b16 %v343
    %v1463 = vunpack.c.h.b16 %v343
    %v1464 = vunpack.c.l.b16 %v344
    %v1465 = vunpack.c.h.b16 %v344
    %v1466 = vunpack.c.l.b16 %v345
    %v1467 = vunpack.c.h.b16 %v345
    %v1468 = vunpack.c.l.b16 %v346
    %v1469 = vunpack.c.h.b16 %v346
    %v1470 = vunpack.c.l.b16 %v347
    %v1471 = vunpack.c.h.b16 %v347
    %v1472 = vunpack.c.l.b16 %v348
    %v1473 = vunpack.c.h.b16 %v348
    %v1474 = vunpack.c.l.b16 %v349
    %v1475 = vunpack.c.h.b16 %v349
    %v1476 = vunpack.c.l.b16 %v350
    %v1477 = vunpack.c.h.b16 %v350
    %v1478 = vunpack.c.l.b16 %v351
    %v1479 = vunpack.c.h.b16 %v351
    %v1480 = vunpack.c.l.b16 %v352
    %v1481 = vunpack.c.h.b16 %v352
    %v1482 = vunpack.c.l.b16 %v353
    %v1483 = vunpack.c.h.b16 %v353
    %v1484 = vunpack.c.l.b16 %v354
    %v1485 = vunpack.c.h.b16 %v354
    %v1486 = vunpack.c.l.b16 %v355
    %v1487 = vunpack.c.h.b16 %v355
    %v1488 = vunpack.c.l.b16 %v356
    %v1489 = vunpack.c.h.b16 %v356
    %v1490 = vunpack.c.l.b16 %v357
    %v1491 = vunpack.c.h.b16 %v357
    %v1492 = vunpack.c.l.b16 %v358
    %v1493 = vunpack.c.h.b16 %v358
    %v1494 = vunpack.c.l.b16 %v359
    %v1495 = vunpack.c.h.b16 %v359
    %v1496 = vunpack.c.l.b16 %v360
    %v1497 = vunpack.c.h.b16 %v360
    %v1498 = vunpack.c.l.b16 %v361
    %v1499 = vunpack.c.h.b16 %v361
    %v1500 = vunpack.c.l.b16 %v362
    %v1501 = vunpack.c.h.b16 %v362
    %v1502 = vunpack.c.l.b16 %v363
    %v1503 = vunpack.c.h.b16 %v363
    %v1504 = vunpack.c.l.b16 %v364
    %v1505 = vunpack.c.h.b16 %v364
    %v1506 = vunpack.c.l.b16 %v365
    %v1507 = vunpack.c.h.b16 %v365
    %v1508 = vunpack.c.l.b16 %v366
    %v1509 = vunpack.c.h.b16 %v366
    %v1510 = vunpack.c.l.b16 %v367
    %v1511 = vunpack.c.h.b16 %v367
    %v1512 = vunpack.c.l.b16 %v368
    %v1513 = vunpack.c.h.b16 %v368
    %v1514 = vunpack.c.l.b16 %v369
    %v1515 = vunpack.c.h.b16 %v369
    %v1516 = vunpack.c.l.b16 %v370
    %v1517 = vunpack.c.h.b16 %v370
    %v1518 = vunpack.c.l.b16 %v371
    %v1519 = vunpack.c.h.b16 %v371
    %v1520 = vunpack.c.l.b16 %v372
    %v1521 = vunpack.c.h.b16 %v372
    %v1522 = vunpack.c.l.b16 %v373
    %v1523 = vunpack.c.h.b16 %v373
    %v1524 = vunpack.c.l.b16 %v374
    %v1525 = vunpack.c.h.b16 %v374
    %v1526 = vunpack.c.l.b16 %v375
    %v1527 = vunpack.c.h.b16 %v375
    %v1528 = vunpack.c.l.b16 %v376
    %v1529 = vunpack.c.h.b16 %v376
    %v1530 = vunpack.c.l.b16 %v377
    %v1531 = vunpack.c.h.b16 %v377
    %v1532 = vunpack.c.l.b16 %v378
    %v1533 = vunpack.c.h.b16 %v378
    %v1534 = vunpack.c.l.b16 %v379
    %v1535 = vunpack.c.h.b16 %v379
    %v1536 = vunpack.c.l.b16 %v380
    %v1537 = vunpack.c.h.b16 %v380
    %v1538 = vunpack.c.l.b16 %v381
    %v1539 = vunpack.c.h.b16 %v381
    %v1540 = vunpack.c.l.b16 %v382
    %v1541 = vunpack.c.h.b16 %v382
    %v1542 = vunpack.c.l.b16 %v383
    %v1543 = vunpack.c.h.b16 %v383
    %v1544 = vunpack.c.l.b16 %v384
    %v1545 = vunpack.c.h.b16 %v384
    %v1546 = vunpack.c.l.b16 %v385
    %v1547 = vunpack.c.h.b16 %v385
    %v1548 = vunpack.c.l.b16 %v386
    %v1549 = vunpack.c.h.b16 %v386
    %v1550 = vunpack.c.l.b16 %v387
    %v1551 = vunpack.c.h.b16 %v387
    %v1552 = vunpack.c.l.b16 %v388
    %v1553 = vunpack.c.h.b16 %v388
    %v1554 = vunpack.c.l.b16 %v389
    %v1555 = vunpack.c.h.b16 %v389
    %v1556 = vunpack.c.l.b16 %v390
    %v1557 = vunpack.c.h.b16 %v390
    %v1558 = vunpack.c.l.b16 %v391
    %v1559 = vunpack.c.h.b16 %v391
    %v1560 = vunpack.c.l.b16 %v392
    %v1561 = vunpack.c.h.b16 %v392
    %v1562 = vunpack.c.l.b16 %v393
    %v1563 = vunpack.c.h.b16 %v393
    %v1564 = vunpack.c.l.b16 %v394
    %v1565 = vunpack.c.h.b16 %v394
    %v1566 = vunpack.c.l.b16 %v395
    %v1567 = vunpack.c.h.b16 %v395
    %v1568 = vunpack.c.l.b16 %v396
    %v1569 = vunpack.c.h.b16 %v396
    %v1570 = vunpack.c.l.b16 %v397
    %v1571 = vunpack.c.h.b16 %v397
    %v1572 = vunpack.c.l.b16 %v398
    %v1573 = vunpack.c.h.b16 %v398
    %v1574 = vunpack.c.l.b16 %v399
    %v1575 = vunpack.c.h.b16 %v399
    %v1576 = vunpack.c.l.b16 %v400
    %v1577 = vunpack.c.h.b16 %v400
    %v1578 = vunpack.c.l.b16 %v401
    %v1579 = vunpack.c.h.b16 %v401
    %v1580 = vunpack.c.l.b16 %v402
    %v1581 = vunpack.c.h.b16 %v402
    %v1582 = vunpack.c.l.b16 %v403
    %v1583 = vunpack.c.h.b16 %v403
    %v1584 = vunpack.c.l.b16 %v404
    %v1585 = vunpack.c.h.b16 %v404
    %v1586 = vunpack.c.l.b16 %v405
    %v1587 = vunpack.c.h.b16 %v405
    %v1588 = vunpack.c.l.b16 %v406
    %v1589 = vunpack.c.h.b16 %v406
    %v1590 = vunpack.c.l.b16 %v407
    %v1591 = vunpack.c.h.b16 %v407
    %v1592 = vunpack.c.l.b16 %v408
    %v1593 = vunpack.c.h.b16 %v408
    %v1594 = vunpack.c.l.b16 %v409
    %v1595 = vunpack.c.h.b16 %v409
    %v1596 = vunpack.c.l.b16 %v410
    %v1597 = vunpack.c.h.b16 %v410
    %v1598 = vunpack.c.l.b16 %v411
    %v1599 = vunpack.c.h.b16 %v411
    %v1600 = vunpack.c.l.b16 %v412
    %v1601 = vunpack.c.h.b16 %v412
    %v1602 = vunpack.c.l.b16 %v413
    %v1603 = vunpack.c.h.b16 %v413
    %v1604 = vunpack.c.l.b16 %v414
    %v1605 = vunpack.c.h.b16 %v414
    %v1606 = vunpack.c.l.b16 %v415
    %v1607 = vunpack.c.h.b16 %v415
    %v1608 = vunpack.c.l.b16 %v416
    %v1609 = vunpack.c.h.b16 %v416
    %v1610 = vunpack.c.l.b16 %v417
    %v1611 = vunpack.c.h.b16 %v417
    %v1612 = vunpack.c.l.b16 %v418
    %v1613 = vunpack.c.h.b16 %v418
    %v1614 = vunpack.c.l.b16 %v419
    %v1615 = vunpack.c.h.b16 %v419
    %v1616 = vunpack.c.l.b16 %v420
    %v1617 = vunpack.c.h.b16 %v420
    %v1618 = vunpack.c.l.b16 %v421
    %v1619 = vunpack.c.h.b16 %v421
    %v1620 = vunpack.c.l.b16 %v422
    %v1621 = vunpack.c.h.b16 %v422
    %v1622 = vunpack.c.l.b16 %v423
    %v1623 = vunpack.c.h.b16 %v423
    %v1624 = vunpack.c.l.b16 %v424
    %v1625 = vunpack.c.h.b16 %v424
    %v1626 = vunpack.c.l.b16 %v425
    %v1627 = vunpack.c.h.b16 %v425
    %v1628 = vunpack.c.l.b16 %v426
    %v1629 = vunpack.c.h.b16 %v426
    %v1630 = vunpack.c.l.b16 %v427
    %v1631 = vunpack.c.h.b16 %v427
    %v1632 = vunpack.c.l.b16 %v428
    %v1633 = vunpack.c.h.b16 %v428
    %v1634 = vunpack.c.l.b16 %v429
    %v1635 = vunpack.c.h.b16 %v429
    %v1636 = vunpack.c.l.b16 %v430
    %v1637 = vunpack.c.h.b16 %v430
    %v1638 = vunpack.c.l.b16 %v431
    %v1639 = vunpack.c.h.b16 %v431
    %v1640 = vunpack.c.l.b16 %v432
    %v1641 = vunpack.c.h.b16 %v432
    %v1642 = vunpack.c.l.b16 %v433
    %v1643 = vunpack.c.h.b16 %v433
    %v1644 = vunpack.c.l.b16 %v434
    %v1645 = vunpack.c.h.b16 %v434
    %v1646 = vunpack.c.l.b16 %v435
    %v1647 = vunpack.c.h.b16 %v435
    %v1648 = vunpack.c.l.b16 %v436
    %v1649 = vunpack.c.h.b16 %v436
    %v1650 = vunpack.c.l.b16 %v437
    %v1651 = vunpack.c.h.b16 %v437
    %v1652 = vunpack.c.l.b16 %v438
    %v1653 = vunpack.c.h.b16 %v438
    %v1654 = vpack.c.b16 %v894, %v886
    %v1655 = vpack.c.b16 %v895, %v887
    %v1656 = vpack.c.b16 %v896, %v888
    %v1657 = vpack.c.b16 %v897, %v889
    %v1658 = vpack.c.b16 %v898, %v890
    %v1659 = vpack.c.b16 %v899, %v891
    %v1660 = vpack.c.b16 %v900, %v892
    %v1661 = vpack.c.b16 %v901, %v893
    %v1662 = vpack.c.b16 %v910, %v902
    %v1663 = vpack.c.b16 %v911, %v903
    %v1664 = vpack.c.b16 %v912, %v904
    %v1665 = vpack.c.b16 %v913, %v905
    %v1666 = vpack.c.b16 %v914, %v906
    %v1667 = vpack.c.b16 %v915, %v907
    %v1668 = vpack.c.b16 %v916, %v908
    %v1669 = vpack.c.b16 %v917, %v909
    %v1670 = vpack.c.b16 %v926, %v918
    %v1671 = vpack.c.b16 %v927, %v919
    %v1672 = vpack.c.b16 %v928, %v920
    %v1673 = vpack.c.b16 %v929, %v921
    %v1674 = vpack.c.b16 %v930, %v922
    %v1675 = vpack.c.b16 %v931, %v923
    %v1676 = vpack.c.b16 %v932, %v924
    %v1677 = vpack.c.b16 %v933, %v925
    %v1678 = vpack.c.b16 %v942, %v934
    %v1679 = vpack.c.b16 %v943, %v935
    %v1680 = vpack.c.b16 %v944, %v936
    %v1681 = vpack.c.b16 %v945, %v937
    %v1682 = vpack.c.b16 %v946, %v938
    %v1683 = vpack.c.b16 %v947, %v939
    %v1684 = vpack.c.b16 %v948, %v940
    %v1685 = vpack.c.b16 %v949, %v941
    %v1686 = vpack.c.b16 %v958, %v950
    %v1687 = vpack.c.b16 %v959, %v951
    %v1688 = vpack.c.b16 %v960, %v952
    %v1689 = vpack.c.b16 %v961, %v953
    %v1690 = vpack.c.b16 %v962, %v954
    %v1691 = vpack.c.b16 %v963, %v955
    %v1692 = vpack.c.b16 %v964, %v956
    %v1693 = vpack.c.b16 %v965, %v957
    %v1694 = vpack.c.b16 %v974, %v966
    %v1695 = vpack.c.b16 %v975, %v967
    %v1696 = vpack.c.b16 %v976, %v968
    %v1697 = vpack.c.b16 %v977, %v969
    %v1698 = vpack.c.b16 %v978, %v970
    %v1699 = vpack.c.b16 %v979, %v971
    %v1700 = vpack.c.b16 %v980, %v972
    %v1701 = vpack.c.b16 %v981, %v973
    %v1702 = vpack.c.b16 %v990, %v982
    %v1703 = vpack.c.b16 %v991, %v983
    %v1704 = vpack.c.b16 %v992, %v984
    %v1705 = vpack.c.b16 %v993, %v985
    %v1706 = vpack.c.b16 %v994, %v986
    %v1707 = vpack.c.b16 %v995, %v987
    %v1708 = vpack.c.b16 %v996, %v988
    %v1709 = vpack.c.b16 %v997, %v989
    %v1710 = vpack.c.b16 %v1006, %v998
    %v1711 = vpack.c.b16 %v1007, %v999
    %v1712 = vpack.c.b16 %v1008, %v1000
    %v1713 = vpack.c.b16 %v1009, %v1001
    %v1714 = vpack.c.b16 %v1010, %v1002
    %v1715 = vpack.c.b16 %v1011, %v1003
    %v1716 = vpack.c.b16 %v1012, %v1004
    %v1717 = vpack.c.b16 %v1013, %v1005
    %v1718 = vpack.c.b16 %v1022, %v1014
    %v1719 = vpack.c.b16 %v1023, %v1015
    %v1720 = vpack.c.b16 %v1024, %v1016
    %v1721 = vpack.c.b16 %v1025, %v1017
    %v1722 = vpack.c.b16 %v1026, %v1018
    %v1723 = vpack.c.b16 %v1027, %v1019
    %v1724 = vpack.c.b16 %v1028, %v1020
    %v1725 = vpack.c.b16 %v1029, %v1021
    %v1726 = vpack.c.b16 %v1038, %v1030
    %v1727 = vpack.c.b16 %v1039, %v1031
    %v1728 = vpack.c.b16 %v1040, %v1032
    %v1729 = vpack.c.b16 %v1041, %v1033
    %v1730 = vpack.c.b16 %v1042, %v1034
    %v1731 = vpack.c.b16 %v1043, %v1035
    %v1732 = vpack.c.b16 %v1044, %v1036
    %v1733 = vpack.c.b16 %v1045, %v1037
    %v1734 = vpack.c.b16 %v1054, %v1046
    %v1735 = vpack.c.b16 %v1055, %v1047
    %v1736 = vpack.c.b16 %v1056, %v1048
    %v1737 = vpack.c.b16 %v1057, %v1049
    %v1738 = vpack.c.b16 %v1058, %v1050
    %v1739 = vpack.c.b16 %v1059, %v1051
    %v1740 = vpack.c.b16 %v1060, %v1052
    %v1741 = vpack.c.b16 %v1061, %v1053
    %v1742 = vpack.c.b16 %v1070, %v1062
    %v1743 = vpack.c.b16 %v1071, %v1063
    %v1744 = vpack.c.b16 %v1072, %v1064
    %v1745 = vpack.c.b16 %v1073, %v1065
    %v1746 = vpack.c.b16 %v1074, %v1066
    %v1747 = vpack.c.b16 %v1075, %v1067
    %v1748 = vpack.c.b16 %v1076, %v1068
    %v1749 = vpack.c.b16 %v1077, %v1069
    %v1750 = vpack.c.b16 %v1086, %v1078
    %v1751 = vpack.c.b16 %v1087, %v1079
    %v1752 = vpack.c.b16 %v1088, %v1080
    %v1753 = vpack.c.b16 %v1089, %v1081
    %v1754 = vpack.c.b16 %v1090, %v1082
    %v1755 = vpack.c.b16 %v1091, %v1083
    %v1756 = vpack.c.b16 %v1092, %v1084
    %v1757 = vpack.c.b16 %v1093, %v1085
    %v1758 = vpack.c.b16 %v1102, %v1094
    %v1759 = vpack.c.b16 %v1103, %v1095
    %v1760 = vpack.c.b16 %v1104, %v1096
    %v1761 = vpack.c.b16 %v1105, %v1097
    %v1762 = vpack.c.b16 %v1106, %v1098
    %v1763 = vpack.c.b16 %v1107, %v1099
    %v1764 = vpack.c.b16 %v1108, %v1100
    %v1765 = vpack.c.b16 %v1109, %v1101
    %v1766 = vpack.c.b16 %v1118, %v1110
    %v1767 = vpack.c.b16 %v1119, %v1111
    %v1768 = vpack.c.b16 %v1120, %v1112
    %v1769 = vpack.c.b16 %v1121, %v1113
    %v1770 = vpack.c.b16 %v1122, %v1114
    %v1771 = vpack.c.b16 %v1123, %v1115
    %v1772 = vpack.c.b16 %v1124, %v1116
    %v1773 = vpack.c.b16 %v1125, %v1117
    %v1774 = vpack.c.b16 %v1134, %v1126
    %v1775 = vpack.c.b16 %v1135, %v1127
    %v1776 = vpack.c.b16 %v1136, %v1128
    %v1777 = vpack.c.b16 %v1137, %v1129
    %v1778 = vpack.c.b16 %v1138, %v1130
    %v1779 = vpack.c.b16 %v1139, %v1131
    %v1780 = vpack.c.b16 %v1140, %v1132
    %v1781 = vpack.c.b16 %v1141, %v1133
    %v1782 = vpack.c.b16 %v1150, %v1142
    %v1783 = vpack.c.b16 %v1151, %v1143
    %v1784 = vpack.c.b16 %v1152, %v1144
    %v1785 = vpack.c.b16 %v1153, %v1145
    %v1786 = vpack.c.b16 %v1154, %v1146
    %v1787 = vpack.c.b16 %v1155, %v1147
    %v1788 = vpack.c.b16 %v1156, %v1148
    %v1789 = vpack.c.b16 %v1157, %v1149
    %v1790 = vpack.c.b16 %v1166, %v1158
    %v1791 = vpack.c.b16 %v1167, %v1159
    %v1792 = vpack.c.b16 %v1168, %v1160
    %v1793 = vpack.c.b16 %v1169, %v1161
    %v1794 = vpack.c.b16 %v1170, %v1162
    %v1795 = vpack.c.b16 %v1171, %v1163
    %v1796 = vpack.c.b16 %v1172, %v1164
    %v1797 = vpack.c.b16 %v1173, %v1165
    %v1798 = vpack.c.b16 %v1182, %v1174
    %v1799 = vpack.c.b16 %v1183, %v1175
    %v1800 = vpack.c.b16 %v1184, %v1176
    %v1801 = vpack.c.b16 %v1185, %v1177
    %v1802 = vpack.c.b16 %v1186, %v1178
    %v1803 = vpack.c.b16 %v1187, %v1179
    %v1804 = vpack.c.b16 %v1188, %v1180
    %v1805 = vpack.c.b16 %v1189, %v1181
    %v1806 = vpack.c.b16 %v1198, %v1190
    %v1807 = vpack.c.b16 %v1199, %v1191
    %v1808 = vpack.c.b16 %v1200, %v1192
    %v1809 = vpack.c.b16 %v1201, %v1193
    %v1810 = vpack.c.b16 %v1202, %v1194
    %v1811 = vpack.c.b16 %v1203, %v1195
    %v1812 = vpack.c.b16 %v1204, %v1196
    %v1813 = vpack.c.b16 %v1205, %v1197
    %v1814 = vpack.c.b16 %v1214, %v1206
    %v1815 = vpack.c.b16 %v1215, %v1207
    %v1816 = vpack.c.b16 %v1216, %v1208
    %v1817 = vpack.c.b16 %v1217, %v1209
    %v1818 = vpack.c.b16 %v1218, %v1210
    %v1819 = vpack.c.b16 %v1219, %v1211
    %v1820 = vpack.c.b16 %v1220, %v1212
    %v1821 = vpack.c.b16 %v1221, %v1213
    %v1822 = vpack.c.b16 %v1230, %v1222
    %v1823 = vpack.c.b16 %v1231, %v1223
    %v1824 = vpack.c.b16 %v1232, %v1224
    %v1825 = vpack.c.b16 %v1233, %v1225
    %v1826 = vpack.c.b16 %v1234, %v1226
    %v1827 = vpack.c.b16 %v1235, %v1227
    %v1828 = vpack.c.b16 %v1236, %v1228
    %v1829 = vpack.c.b16 %v1237, %v1229
    %v1830 = vpack.c.b16 %v1246, %v1238
    %v1831 = vpack.c.b16 %v1247, %v1239
    %v1832 = vpack.c.b16 %v1248, %v1240
    %v1833 = vpack.c.b16 %v1249, %v1241
    %v1834 = vpack.c.b16 %v1250, %v1242
    %v1835 = vpack.c.b16 %v1251, %v1243
    %v1836 = vpack.c.b16 %v1252, %v1244
    %v1837 = vpack.c.b16 %v1253, %v1245
    %v1838 = vpack.c.b16 %v1262, %v1254
    %v1839 = vpack.c.b16 %v1263, %v1255
    %v1840 = vpack.c.b16 %v1264, %v1256
    %v1841 = vpack.c.b16 %v1265, %v1257
    %v1842 = vpack.c.b16 %v1266, %v1258
    %v1843 = vpack.c.b16 %v1267, %v1259
    %v1844 = vpack.c.b16 %v1268, %v1260
    %v1845 = vpack.c.b16 %v1269, %v1261
    %v1846 = vpack.c.b16 %v1278, %v1270
    %v1847 = vpack.c.b16 %v1279, %v1271
    %v1848 = vpack.c.b16 %v1280, %v1272
    %v1849 = vpack.c.b16 %v1281, %v1273
    %v1850 = vpack.c.b16 %v1282, %v1274
    %v1851 = vpack.c.b16 %v1283, %v1275
    %v1852 = vpack.c.b16 %v1284, %v1276
    %v1853 = vpack.c.b16 %v1285, %v1277
    %v1854 = vpack.c.b16 %v1294, %v1286
    %v1855 = vpack.c.b16 %v1295, %v1287
    %v1856 = vpack.c.b16 %v1296, %v1288
    %v1857 = vpack.c.b16 %v1297, %v1289
    %v1858 = vpack.c.b16 %v1298, %v1290
    %v1859 = vpack.c.b16 %v1299, %v1291
    %v1860 = vpack.c.b16 %v1300, %v1292
    %v1861 = vpack.c.b16 %v1301, %v1293
    %v1862 = vpack.c.b16 %v1310, %v1302
    %v1863 = vpack.c.b16 %v1311, %v1303
    %v1864 = vpack.c.b16 %v1312, %v1304
    %v1865 = vpack.c.b16 %v1313, %v1305
    %v1866 = vpack.c.b16 %v1314, %v1306
    %v1867 = vpack.c.b16 %v1315, %v1307
    %v1868 = vpack.c.b16 %v1316, %v1308
    %v1869 = vpack.c.b16 %v1317, %v1309
    %v1870 = vpack.c.b16 %v1326, %v1318
    %v1871 = vpack.c.b16 %v1327, %v1319
    %v1872 = vpack.c.b16 %v1328, %v1320
    %v1873 = vpack.c.b16 %v1329, %v1321
    %v1874 = vpack.c.b16 %v1330, %v1322
    %v1875 = vpack.c.b16 %v1331, %v1323
    %v1876 = vpack.c.b16 %v1332, %v1324
    %v1877 = vpack.c.b16 %v1333, %v1325
    %v1878 = vpack.c.b16 %v1342, %v1334
    %v1879 = vpack.c.b16 %v1343, %v1335
    %v1880 = vpack.c.b16 %v1344, %v1336
    %v1881 = vpack.c.b16 %v1345, %v1337
    %v1882 = vpack.c.b16 %v1346, %v1338
    %v1883 = vpack.c.b16 %v1347, %v1339
    %v1884 = vpack.c.b16 %v1348, %v1340
    %v1885 = vpack.c.b16 %v1349, %v1341
    %v1886 = vpack.c.b16 %v1358, %v1350
    %v1887 = vpack.c.b16 %v1359, %v1351
    %v1888 = vpack.c.b16 %v1360, %v1352
    %v1889 = vpack.c.b16 %v1361, %v1353
    %v1890 = vpack.c.b16 %v1362, %v1354
    %v1891 = vpack.c.b16 %v1363, %v1355
    %v1892 = vpack.c.b16 %v1364, %v1356
    %v1893 = vpack.c.b16 %v1365, %v1357
    %v1894 = vpack.c.b16 %v1374, %v1366
    %v1895 = vpack.c.b16 %v1375, %v1367
    %v1896 = vpack.c.b16 %v1376, %v1368
    %v1897 = vpack.c.b16 %v1377, %v1369
    %v1898 = vpack.c.b16 %v1378, %v1370
    %v1899 = vpack.c.b16 %v1379, %v1371
    %v1900 = vpack.c.b16 %v1380, %v1372
    %v1901 = vpack.c.b16 %v1381, %v1373
    %v1902 = vpack.c.b16 %v1390, %v1382
    %v1903 = vpack.c.b16 %v1391, %v1383
    %v1904 = vpack.c.b16 %v1392, %v1384
    %v1905 = vpack.c.b16 %v1393, %v1385
    %v1906 = vpack.c.b16 %v1394, %v1386
    %v1907 = vpack.c.b16 %v1395, %v1387
    %v1908 = vpack.c.b16 %v1396, %v1388
    %v1909 = vpack.c.b16 %v1397, %v1389
    %v1910 = vpack.c.b16 %v1406, %v1398
    %v1911 = vpack.c.b16 %v1407, %v1399
    %v1912 = vpack.c.b16 %v1408, %v1400
    %v1913 = vpack.c.b16 %v1409, %v1401
    %v1914 = vpack.c.b16 %v1410, %v1402
    %v1915 = vpack.c.b16 %v1411, %v1403
    %v1916 = vpack.c.b16 %v1412, %v1404
    %v1917 = vpack.c.b16 %v1413, %v1405
    %v1918 = vpack.c.b16 %v1422, %v1414
    %v1919 = vpack.c.b16 %v1423, %v1415
    %v1920 = vpack.c.b16 %v1424, %v1416
    %v1921 = vpack.c.b16 %v1425, %v1417
    %v1922 = vpack.c.b16 %v1426, %v1418
    %v1923 = vpack.c.b16 %v1427, %v1419
    %v1924 = vpack.c.b16 %v1428, %v1420
    %v1925 = vpack.c.b16 %v1429, %v1421
    %v1926 = vpack.c.b16 %v1438, %v1430
    %v1927 = vpack.c.b16 %v1439, %v1431
    %v1928 = vpack.c.b16 %v1440, %v1432
    %v1929 = vpack.c.b16 %v1441, %v1433
    %v1930 = vpack.c.b16 %v1442, %v1434
    %v1931 = vpack.c.b16 %v1443, %v1435
    %v1932 = vpack.c.b16 %v1444, %v1436
    %v1933 = vpack.c.b16 %v1445, %v1437
    %v1934 = vpack.c.b16 %v1454, %v1446
    %v1935 = vpack.c.b16 %v1455, %v1447
    %v1936 = vpack.c.b16 %v1456, %v1448
    %v1937 = vpack.c.b16 %v1457, %v1449
    %v1938 = vpack.c.b16 %v1458, %v1450
    %v1939 = vpack.c.b16 %v1459, %v1451
    %v1940 = vpack.c.b16 %v1460, %v1452
    %v1941 = vpack.c.b16 %v1461, %v1453
    %v1942 = vpack.c.b16 %v1470, %v1462
    %v1943 = vpack.c.b16 %v1471, %v1463
    %v1944 = vpack.c.b16 %v1472, %v1464
    %v1945 = vpack.c.b16 %v1473, %v1465
    %v1946 = vpack.c.b16 %v1474, %v1466
    %v1947 = vpack.c.b16 %v1475, %v1467
    %v1948 = vpack.c.b16 %v1476, %v1468
    %v1949 = vpack.c.b16 %v1477, %v1469
    %v1950 = vpack.c.b16 %v1486, %v1478
    %v1951 = vpack.c.b16 %v1487, %v1479
    %v1952 = vpack.c.b16 %v1488, %v1480
    %v1953 = vpack.c.b16 %v1489, %v1481
    %v1954 = vpack.c.b16 %v1490, %v1482
    %v1955 = vpack.c.b16 %v1491, %v1483
    %v1956 = vpack.c.b16 %v1492, %v1484
    %v1957 = vpack.c.b16 %v1493, %v1485
    %v1958 = vpack.c.b16 %v1502, %v1494
    %v1959 = vpack.c.b16 %v1503, %v1495
    %v1960 = vpack.c.b16 %v1504, %v1496
    %v1961 = vpack.c.b16 %v1505, %v1497
    %v1962 = vpack.c.b16 %v1506, %v1498
    %v1963 = vpack.c.b16 %v1507, %v1499
    %v1964 = vpack.c.b16 %v1508, %v1500
    %v1965 = vpack.c.b16 %v1509, %v1501
    %v1966 = vpack.c.b16 %v1518, %v1510
    %v1967 = vpack.c.b16 %v1519, %v1511
    %v1968 = vpack.c.b16 %v1520, %v1512
    %v1969 = vpack.c.b16 %v1521, %v1513
    %v1970 = vpack.c.b16 %v1522, %v1514
    %v1971 = vpack.c.b16 %v1523, %v1515
    %v1972 = vpack.c.b16 %v1524, %v1516
    %v1973 = vpack.c.b16 %v1525, %v1517
    %v1974 = vpack.c.b16 %v1534, %v1526
    %v1975 = vpack.c.b16 %v1535, %v1527
    %v1976 = vpack.c.b16 %v1536, %v1528
    %v1977 = vpack.c.b16 %v1537, %v1529
    %v1978 = vpack.c.b16 %v1538, %v1530
    %v1979 = vpack.c.b16 %v1539, %v1531
    %v1980 = vpack.c.b16 %v1540, %v1532
    %v1981 = vpack.c.b16 %v1541, %v1533
    %v1982 = vpack.c.b16 %v1550, %v1542
    %v1983 = vpack.c.b16 %v1551, %v1543
    %v1984 = vpack.c.b16 %v1552, %v1544
    %v1985 = vpack.c.b16 %v1553, %v1545
    %v1986 = vpack.c.b16 %v1554, %v1546
    %v1987 = vpack.c.b16 %v1555, %v1547
    %v1988 = vpack.c.b16 %v1556, %v1548
    %v1989 = vpack.c.b16 %v1557, %v1549
    %v1990 = vpack.c.b16 %v1566, %v1558
    %v1991 = vpack.c.b16 %v1567, %v1559
    %v1992 = vpack.c.b16 %v1568, %v1560
    %v1993 = vpack.c.b16 %v1569, %v1561
    %v1994 = vpack.c.b16 %v1570, %v1562
    %v1995 = vpack.c.b16 %v1571, %v1563
    %v1996 = vpack.c.b16 %v1572, %v1564
    %v1997 = vpack.c.b16 %v1573, %v1565
    %v1998 = vpack.c.b16 %v1582, %v1574
    %v1999 = vpack.c.b16 %v1583, %v1575
    %v2000 = vpack.c.b16 %v1584, %v1576
    %v2001 = vpack.c.b16 %v1585, %v1577
    %v2002 = vpack.c.b16 %v1586, %v1578
    %v2003 = vpack.c.b16 %v1587, %v1579
    %v2004 = vpack.c.b16 %v1588, %v1580
    %v2005 = vpack.c.b16 %v1589, %v1581
    %v2006 = vpack.c.b16 %v1598, %v1590
    %v2007 = vpack.c.b16 %v1599, %v1591
    %v2008 = vpack.c.b16 %v1600, %v1592
    %v2009 = vpack.c.b16 %v1601, %v1593
    %v2010 = vpack.c.b16 %v1602, %v1594
    %v2011 = vpack.c.b16 %v1603, %v1595
    %v2012 = vpack.c.b16 %v1604, %v1596
    %v2013 = vpack.c.b16 %v1605, %v1597
    %v2014 = vpack.c.b16 %v1614, %v1606
    %v2015 = vpack.c.b16 %v1615, %v1607
    %v2016 = vpack.c.b16 %v1616, %v1608
    %v2017 = vpack.c.b16 %v1617, %v1609
    %v2018 = vpack.c.b16 %v1618, %v1610
    %v2019 = vpack.c.b16 %v1619, %v1611
    %v2020 = vpack.c.b16 %v1620, %v1612
    %v2021 = vpack.c.b16 %v1621, %v1613
    %v2022 = vpack.c.b16 %v1630, %v1622
    %v2023 = vpack.c.b16 %v1631, %v1623
    %v2024 = vpack.c.b16 %v1632, %v1624
    %v2025 = vpack.c.b16 %v1633, %v1625
    %v2026 = vpack.c.b16 %v1634, %v1626
    %v2027 = vpack.c.b16 %v1635, %v1627
    %v2028 = vpack.c.b16 %v1636, %v1628
    %v2029 = vpack.c.b16 %v1637, %v1629
    %v2030 = vpack.c.b16 %v1646, %v1638
    %v2031 = vpack.c.b16 %v1647, %v1639
    %v2032 = vpack.c.b16 %v1648, %v1640
    %v2033 = vpack.c.b16 %v1649, %v1641
    %v2034 = vpack.c.b16 %v1650, %v1642
    %v2035 = vpack.c.b16 %v1651, %v1643
    %v2036 = vpack.c.b16 %v1652, %v1644
    %v2037 = vpack.c.b16 %v1653, %v1645
    %2422 = vmatprep.subr.bf16.mxu0 %v1655
    %2423 = vmatpush1.bf16.msra.mxu0 %v1654
    %2424 = vmatprep.subr.bf16.mxu0 %v1663
    %2425 = vmatpush1.bf16.msra.mxu0 %v1662
    %2426 = vmatprep.subr.bf16.mxu0 %v1671
    %2427 = vmatpush1.bf16.msra.mxu0 %v1670
    %2428 = vmatprep.subr.bf16.mxu0 %v1679
    %2429 = vmatpush1.bf16.msra.mxu0 %v1678
    %2430 = vmatprep.subr.bf16.mxu0 %v1687
    %2431 = vmatpush1.bf16.msra.mxu0 %v1686
    %2432 = vmatprep.subr.bf16.mxu0 %v1695
    %2433 = vmatpush1.bf16.msra.mxu0 %v1694
    %2434 = vmatprep.subr.bf16.mxu0 %v1703
    %2435 = vmatpush1.bf16.msra.mxu0 %v1702
    %2436 = vmatprep.subr.bf16.mxu0 %v1711
    %2437 = vmatpush1.bf16.msra.mxu0 %v1710
    %2438 = vmatprep.subr.bf16.mxu0 %v1719
    %2439 = vmatpush1.bf16.msra.mxu0 %v1718
    %2440 = vmatprep.subr.bf16.mxu0 %v1727
    %2441 = vmatpush1.bf16.msra.mxu0 %v1726
    %2442 = vmatprep.subr.bf16.mxu0 %v1735
    %2443 = vmatpush1.bf16.msra.mxu0 %v1734
    %2444 = vmatprep.subr.bf16.mxu0 %v1743
    %2445 = vmatpush1.bf16.msra.mxu0 %v1742
    %2446 = vmatprep.subr.bf16.mxu0 %v1751
    %2447 = vmatpush1.bf16.msra.mxu0 %v1750
    %2448 = vmatprep.subr.bf16.mxu0 %v1759
    %2449 = vmatpush1.bf16.msra.mxu0 %v1758
    %2450 = vmatprep.subr.bf16.mxu0 %v1767
    %2451 = vmatpush1.bf16.msra.mxu0 %v1766
    %2452 = vmatprep.subr.bf16.mxu0 %v1775
    %2453 = vmatpush1.bf16.msra.mxu0 %v1774
    %2454 = vmatprep.mubr.bf16.mxu0 %v491
    %2455 = vmatmul.mubr.bf16.gmra.mrb[0].mxu0 %v490
    %v2456 = vpop.f32.mrb[0].mxu0
    %v2457 = vadd.f32 %v444, %v2456
    %v2458 = vpop.f32.mrb[0].mxu0
    %v2459 = vadd.f32 %v448, %v2458
    %v2460 = vpop.f32.mrb[0].mxu0
    %v2461 = vpop.f32.mrb[0].mxu0
    %2462 = vdwg.mxu0
    %2463 = vmatprep.subr.bf16.mxu0 %v1783
    %2464 = vmatpush1.bf16.msra.mxu0 %v1782
    %2465 = vmatprep.subr.bf16.mxu0 %v1791
    %2466 = vmatpush1.bf16.msra.mxu0 %v1790
    %2467 = vmatprep.subr.bf16.mxu0 %v1799
    %2468 = vmatpush1.bf16.msra.mxu0 %v1798
    %2469 = vmatprep.subr.bf16.mxu0 %v1807
    %2470 = vmatpush1.bf16.msra.mxu0 %v1806
    %2471 = vmatprep.subr.bf16.mxu0 %v1815
    %2472 = vmatpush1.bf16.msra.mxu0 %v1814
    %2473 = vmatprep.subr.bf16.mxu0 %v1823
    %2474 = vmatpush1.bf16.msra.mxu0 %v1822
    %2475 = vmatprep.subr.bf16.mxu0 %v1831
    %2476 = vmatpush1.bf16.msra.mxu0 %v1830
    %2477 = vmatprep.subr.bf16.mxu0 %v1839
    %2478 = vmatpush1.bf16.msra.mxu0 %v1838
    %2479 = vmatprep.subr.bf16.mxu0 %v1847
    %2480 = vmatpush1.bf16.msra.mxu0 %v1846
    %2481 = vmatprep.subr.bf16.mxu0 %v1855
    %2482 = vmatpush1.bf16.msra.mxu0 %v1854
    %2483 = vmatprep.subr.bf16.mxu0 %v1863
    %2484 = vmatpush1.bf16.msra.mxu0 %v1862
    %2485 = vmatprep.subr.bf16.mxu0 %v1871
    %2486 = vmatpush1.bf16.msra.mxu0 %v1870
    %2487 = vmatprep.subr.bf16.mxu0 %v1879
    %2488 = vmatpush1.bf16.msra.mxu0 %v1878
    %2489 = vmatprep.subr.bf16.mxu0 %v1887
    %2490 = vmatpush1.bf16.msra.mxu0 %v1886
    %2491 = vmatprep.subr.bf16.mxu0 %v1895
    %2492 = vmatpush1.bf16.msra.mxu0 %v1894
    %2493 = vmatprep.subr.bf16.mxu0 %v1903
    %2494 = vmatpush1.bf16.msra.mxu0 %v1902
    %2495 = vmatprep.mubr.bf16.mxu0 %v493
    %2496 = vmatmul.mubr.bf16.gmra.mrb[0].mxu0 %v492
    %v2497 = vpop.f32.mrb[0].mxu0
    %v2498 = vadd.f32 %v2457, %v2497
    %v2499 = vpop.f32.mrb[0].mxu0
    %v2500 = vadd.f32 %v2459, %v2499
    %v2501 = vpop.f32.mrb[0].mxu0
    %v2502 = vpop.f32.mrb[0].mxu0
    %2503 = vdwg.mxu0
    %2504 = vmatprep.subr.bf16.mxu0 %v1911
    %2505 = vmatpush1.bf16.msra.mxu0 %v1910
    %2506 = vmatprep.subr.bf16.mxu0 %v1919
    %2507 = vmatpush1.bf16.msra.mxu0 %v1918
    %2508 = vmatprep.subr.bf16.mxu0 %v1927
    %2509 = vmatpush1.bf16.msra.mxu0 %v1926
    %2510 = vmatprep.subr.bf16.mxu0 %v1935
    %2511 = vmatpush1.bf16.msra.mxu0 %v1934
    %2512 = vmatprep.subr.bf16.mxu0 %v1943
    %2513 = vmatpush1.bf16.msra.mxu0 %v1942
    %2514 = vmatprep.subr.bf16.mxu0 %v1951
    %2515 = vmatpush1.bf16.msra.mxu0 %v1950
    %2516 = vmatprep.subr.bf16.mxu0 %v1959
    %2517 = vmatpush1.bf16.msra.mxu0 %v1958
    %2518 = vmatprep.subr.bf16.mxu0 %v1967
    %2519 = vmatpush1.bf16.msra.mxu0 %v1966
    %2520 = vmatprep.subr.bf16.mxu0 %v1975
    %2521 = vmatpush1.bf16.msra.mxu0 %v1974
    %2522 = vmatprep.subr.bf16.mxu0 %v1983
    %2523 = vmatpush1.bf16.msra.mxu0 %v1982
    %2524 = vmatprep.subr.bf16.mxu0 %v1991
    %2525 = vmatpush1.bf16.msra.mxu0 %v1990
    %2526 = vmatprep.subr.bf16.mxu0 %v1999
    %2527 = vmatpush1.bf16.msra.mxu0 %v1998
    %2528 = vmatprep.subr.bf16.mxu0 %v2007
    %2529 = vmatpush1.bf16.msra.mxu0 %v2006
    %2530 = vmatprep.subr.bf16.mxu0 %v2015
    %2531 = vmatpush1.bf16.msra.mxu0 %v2014
    %2532 = vmatprep.subr.bf16.mxu0 %v2023
    %2533 = vmatpush1.bf16.msra.mxu0 %v2022
    %2534 = vmatprep.subr.bf16.mxu0 %v2031
    %2535 = vmatpush1.bf16.msra.mxu0 %v2030
    %2536 = vmatprep.mubr.bf16.mxu0 %v495
    %2537 = vmatmul.mubr.bf16.gmra.mrb[0].mxu0 %v494
    %v2538 = vpop.f32.mrb[0].mxu0
    %v2539 = vadd.f32 %v2498, %v2538
    %v2540 = vpop.f32.mrb[0].mxu0
    %v2541 = vadd.f32 %v2500, %v2540
    %v2542 = vpop.f32.mrb[0].mxu0
    %v2543 = vpop.f32.mrb[0].mxu0
    %2544 = vdwg.mxu0
    %2545 = vmatprep.subr.bf16.mxu0 %v1657
    %2546 = vmatpush1.bf16.msra.mxu0 %v1656
    %2547 = vmatprep.subr.bf16.mxu0 %v1665
    %2548 = vmatpush1.bf16.msra.mxu0 %v1664
    %2549 = vmatprep.subr.bf16.mxu0 %v1673
    %2550 = vmatpush1.bf16.msra.mxu0 %v1672
    %2551 = vmatprep.subr.bf16.mxu0 %v1681
    %2552 = vmatpush1.bf16.msra.mxu0 %v1680
    %2553 = vmatprep.subr.bf16.mxu0 %v1689
    %2554 = vmatpush1.bf16.msra.mxu0 %v1688
    %2555 = vmatprep.subr.bf16.mxu0 %v1697
    %2556 = vmatpush1.bf16.msra.mxu0 %v1696
    %2557 = vmatprep.subr.bf16.mxu0 %v1705
    %2558 = vmatpush1.bf16.msra.mxu0 %v1704
    %2559 = vmatprep.subr.bf16.mxu0 %v1713
    %2560 = vmatpush1.bf16.msra.mxu0 %v1712
    %2561 = vmatprep.subr.bf16.mxu0 %v1721
    %2562 = vmatpush1.bf16.msra.mxu0 %v1720
    %2563 = vmatprep.subr.bf16.mxu0 %v1729
    %2564 = vmatpush1.bf16.msra.mxu0 %v1728
    %2565 = vmatprep.subr.bf16.mxu0 %v1737
    %2566 = vmatpush1.bf16.msra.mxu0 %v1736
    %2567 = vmatprep.subr.bf16.mxu0 %v1745
    %2568 = vmatpush1.bf16.msra.mxu0 %v1744
    %2569 = vmatprep.subr.bf16.mxu0 %v1753
    %2570 = vmatpush1.bf16.msra.mxu0 %v1752
    %2571 = vmatprep.subr.bf16.mxu0 %v1761
    %2572 = vmatpush1.bf16.msra.mxu0 %v1760
    %2573 = vmatprep.subr.bf16.mxu0 %v1769
    %2574 = vmatpush1.bf16.msra.mxu0 %v1768
    %2575 = vmatprep.subr.bf16.mxu0 %v1777
    %2576 = vmatpush1.bf16.msra.mxu0 %v1776
    %2577 = vmatprep.mubr.bf16.mxu0 %v491
    %2578 = vmatmul.mubr.bf16.gmra.mrb[0].mxu0 %v490
    %v2579 = vpop.f32.mrb[0].mxu0
    %v2580 = vadd.f32 %v452, %v2579
    %v2581 = vpop.f32.mrb[0].mxu0
    %v2582 = vadd.f32 %v456, %v2581
    %v2583 = vpop.f32.mrb[0].mxu0
    %v2584 = vpop.f32.mrb[0].mxu0
    %2585 = vdwg.mxu0
    %2586 = vmatprep.subr.bf16.mxu0 %v1785
    %2587 = vmatpush1.bf16.msra.mxu0 %v1784
    %2588 = vmatprep.subr.bf16.mxu0 %v1793
    %2589 = vmatpush1.bf16.msra.mxu0 %v1792
    %2590 = vmatprep.subr.bf16.mxu0 %v1801
    %2591 = vmatpush1.bf16.msra.mxu0 %v1800
    %2592 = vmatprep.subr.bf16.mxu0 %v1809
    %2593 = vmatpush1.bf16.msra.mxu0 %v1808
    %2594 = vmatprep.subr.bf16.mxu0 %v1817
    %2595 = vmatpush1.bf16.msra.mxu0 %v1816
    %2596 = vmatprep.subr.bf16.mxu0 %v1825
    %2597 = vmatpush1.bf16.msra.mxu0 %v1824
    %2598 = vmatprep.subr.bf16.mxu0 %v1833
    %2599 = vmatpush1.bf16.msra.mxu0 %v1832
    %2600 = vmatprep.subr.bf16.mxu0 %v1841
    %2601 = vmatpush1.bf16.msra.mxu0 %v1840
    %2602 = vmatprep.subr.bf16.mxu0 %v1849
    %2603 = vmatpush1.bf16.msra.mxu0 %v1848
    %2604 = vmatprep.subr.bf16.mxu0 %v1857
    %2605 = vmatpush1.bf16.msra.mxu0 %v1856
    %2606 = vmatprep.subr.bf16.mxu0 %v1865
    %2607 = vmatpush1.bf16.msra.mxu0 %v1864
    %2608 = vmatprep.subr.bf16.mxu0 %v1873
    %2609 = vmatpush1.bf16.msra.mxu0 %v1872
    %2610 = vmatprep.subr.bf16.mxu0 %v1881
    %2611 = vmatpush1.bf16.msra.mxu0 %v1880
    %2612 = vmatprep.subr.bf16.mxu0 %v1889
    %2613 = vmatpush1.bf16.msra.mxu0 %v1888
    %2614 = vmatprep.subr.bf16.mxu0 %v1897
    %2615 = vmatpush1.bf16.msra.mxu0 %v1896
    %2616 = vmatprep.subr.bf16.mxu0 %v1905
    %2617 = vmatpush1.bf16.msra.mxu0 %v1904
    %2618 = vmatprep.mubr.bf16.mxu0 %v493
    %2619 = vmatmul.mubr.bf16.gmra.mrb[0].mxu0 %v492
    %v2620 = vpop.f32.mrb[0].mxu0
    %v2621 = vadd.f32 %v2580, %v2620
    %v2622 = vpop.f32.mrb[0].mxu0
    %v2623 = vadd.f32 %v2582, %v2622
    %v2624 = vpop.f32.mrb[0].mxu0
    %v2625 = vpop.f32.mrb[0].mxu0
    %2626 = vdwg.mxu0
    %2627 = vmatprep.subr.bf16.mxu0 %v1913
    %2628 = vmatpush1.bf16.msra.mxu0 %v1912
    %2629 = vmatprep.subr.bf16.mxu0 %v1921
    %2630 = vmatpush1.bf16.msra.mxu0 %v1920
    %2631 = vmatprep.subr.bf16.mxu0 %v1929
    %2632 = vmatpush1.bf16.msra.mxu0 %v1928
    %2633 = vmatprep.subr.bf16.mxu0 %v1937
    %2634 = vmatpush1.bf16.msra.mxu0 %v1936
    %2635 = vmatprep.subr.bf16.mxu0 %v1945
    %2636 = vmatpush1.bf16.msra.mxu0 %v1944
    %2637 = vmatprep.subr.bf16.mxu0 %v1953
    %2638 = vmatpush1.bf16.msra.mxu0 %v1952
    %2639 = vmatprep.subr.bf16.mxu0 %v1961
    %2640 = vmatpush1.bf16.msra.mxu0 %v1960
    %2641 = vmatprep.subr.bf16.mxu0 %v1969
    %2642 = vmatpush1.bf16.msra.mxu0 %v1968
    %2643 = vmatprep.subr.bf16.mxu0 %v1977
    %2644 = vmatpush1.bf16.msra.mxu0 %v1976
    %2645 = vmatprep.subr.bf16.mxu0 %v1985
    %2646 = vmatpush1.bf16.msra.mxu0 %v1984
    %2647 = vmatprep.subr.bf16.mxu0 %v1993
    %2648 = vmatpush1.bf16.msra.mxu0 %v1992
    %2649 = vmatprep.subr.bf16.mxu0 %v2001
    %2650 = vmatpush1.bf16.msra.mxu0 %v2000
    %2651 = vmatprep.subr.bf16.mxu0 %v2009
    %2652 = vmatpush1.bf16.msra.mxu0 %v2008
    %2653 = vmatprep.subr.bf16.mxu0 %v2017
    %2654 = vmatpush1.bf16.msra.mxu0 %v2016
    %2655 = vmatprep.subr.bf16.mxu0 %v2025
    %2656 = vmatpush1.bf16.msra.mxu0 %v2024
    %2657 = vmatprep.subr.bf16.mxu0 %v2033
    %2658 = vmatpush1.bf16.msra.mxu0 %v2032
    %2659 = vmatprep.mubr.bf16.mxu0 %v495
    %2660 = vmatmul.mubr.bf16.gmra.mrb[0].mxu0 %v494
    %v2661 = vpop.f32.mrb[0].mxu0
    %v2662 = vadd.f32 %v2621, %v2661
    %v2663 = vpop.f32.mrb[0].mxu0
    %v2664 = vadd.f32 %v2623, %v2663
    %v2665 = vpop.f32.mrb[0].mxu0
    %v2666 = vpop.f32.mrb[0].mxu0
    %2667 = vdwg.mxu0
    %2668 = vmatprep.subr.bf16.mxu0 %v1659
    %2669 = vmatpush1.bf16.msra.mxu0 %v1658
    %2670 = vmatprep.subr.bf16.mxu0 %v1667
    %2671 = vmatpush1.bf16.msra.mxu0 %v1666
    %2672 = vmatprep.subr.bf16.mxu0 %v1675
    %2673 = vmatpush1.bf16.msra.mxu0 %v1674
    %2674 = vmatprep.subr.bf16.mxu0 %v1683
    %2675 = vmatpush1.bf16.msra.mxu0 %v1682
    %2676 = vmatprep.subr.bf16.mxu0 %v1691
    %2677 = vmatpush1.bf16.msra.mxu0 %v1690
    %2678 = vmatprep.subr.bf16.mxu0 %v1699
    %2679 = vmatpush1.bf16.msra.mxu0 %v1698
    %2680 = vmatprep.subr.bf16.mxu0 %v1707
    %2681 = vmatpush1.bf16.msra.mxu0 %v1706
    %2682 = vmatprep.subr.bf16.mxu0 %v1715
    %2683 = vmatpush1.bf16.msra.mxu0 %v1714
    %2684 = vmatprep.subr.bf16.mxu0 %v1723
    %2685 = vmatpush1.bf16.msra.mxu0 %v1722
    %2686 = vmatprep.subr.bf16.mxu0 %v1731
    %2687 = vmatpush1.bf16.msra.mxu0 %v1730
    %2688 = vmatprep.subr.bf16.mxu0 %v1739
    %2689 = vmatpush1.bf16.msra.mxu0 %v1738
    %2690 = vmatprep.subr.bf16.mxu0 %v1747
    %2691 = vmatpush1.bf16.msra.mxu0 %v1746
    %2692 = vmatprep.subr.bf16.mxu0 %v1755
    %2693 = vmatpush1.bf16.msra.mxu0 %v1754
    %2694 = vmatprep.subr.bf16.mxu0 %v1763
    %2695 = vmatpush1.bf16.msra.mxu0 %v1762
    %2696 = vmatprep.subr.bf16.mxu0 %v1771
    %2697 = vmatpush1.bf16.msra.mxu0 %v1770
    %2698 = vmatprep.subr.bf16.mxu0 %v1779
    %2699 = vmatpush1.bf16.msra.mxu0 %v1778
    %2700 = vmatprep.mubr.bf16.mxu0 %v491
    %2701 = vmatmul.mubr.bf16.gmra.mrb[0].mxu0 %v490
    %v2702 = vpop.f32.mrb[0].mxu0
    %v2703 = vadd.f32 %v460, %v2702
    %v2704 = vpop.f32.mrb[0].mxu0
    %v2705 = vadd.f32 %v464, %v2704
    %v2706 = vpop.f32.mrb[0].mxu0
    %v2707 = vpop.f32.mrb[0].mxu0
    %2708 = vdwg.mxu0
    %2709 = vmatprep.subr.bf16.mxu0 %v1787
    %2710 = vmatpush1.bf16.msra.mxu0 %v1786
    %2711 = vmatprep.subr.bf16.mxu0 %v1795
    %2712 = vmatpush1.bf16.msra.mxu0 %v1794
    %2713 = vmatprep.subr.bf16.mxu0 %v1803
    %2714 = vmatpush1.bf16.msra.mxu0 %v1802
    %2715 = vmatprep.subr.bf16.mxu0 %v1811
    %2716 = vmatpush1.bf16.msra.mxu0 %v1810
    %2717 = vmatprep.subr.bf16.mxu0 %v1819
    %2718 = vmatpush1.bf16.msra.mxu0 %v1818
    %2719 = vmatprep.subr.bf16.mxu0 %v1827
    %2720 = vmatpush1.bf16.msra.mxu0 %v1826
    %2721 = vmatprep.subr.bf16.mxu0 %v1835
    %2722 = vmatpush1.bf16.msra.mxu0 %v1834
    %2723 = vmatprep.subr.bf16.mxu0 %v1843
    %2724 = vmatpush1.bf16.msra.mxu0 %v1842
    %2725 = vmatprep.subr.bf16.mxu0 %v1851
    %2726 = vmatpush1.bf16.msra.mxu0 %v1850
    %2727 = vmatprep.subr.bf16.mxu0 %v1859
    %2728 = vmatpush1.bf16.msra.mxu0 %v1858
    %2729 = vmatprep.subr.bf16.mxu0 %v1867
    %2730 = vmatpush1.bf16.msra.mxu0 %v1866
    %2731 = vmatprep.subr.bf16.mxu0 %v1875
    %2732 = vmatpush1.bf16.msra.mxu0 %v1874
    %2733 = vmatprep.subr.bf16.mxu0 %v1883
    %2734 = vmatpush1.bf16.msra.mxu0 %v1882
    %2735 = vmatprep.subr.bf16.mxu0 %v1891
    %2736 = vmatpush1.bf16.msra.mxu0 %v1890
    %2737 = vmatprep.subr.bf16.mxu0 %v1899
    %2738 = vmatpush1.bf16.msra.mxu0 %v1898
    %2739 = vmatprep.subr.bf16.mxu0 %v1907
    %2740 = vmatpush1.bf16.msra.mxu0 %v1906
    %2741 = vmatprep.mubr.bf16.mxu0 %v493
    %2742 = vmatmul.mubr.bf16.gmra.mrb[0].mxu0 %v492
    %v2743 = vpop.f32.mrb[0].mxu0
    %v2744 = vadd.f32 %v2703, %v2743
    %v2745 = vpop.f32.mrb[0].mxu0
    %v2746 = vadd.f32 %v2705, %v2745
    %v2747 = vpop.f32.mrb[0].mxu0
    %v2748 = vpop.f32.mrb[0].mxu0
    %2749 = vdwg.mxu0
    %2750 = vmatprep.subr.bf16.mxu0 %v1915
    %2751 = vmatpush1.bf16.msra.mxu0 %v1914
    %2752 = vmatprep.subr.bf16.mxu0 %v1923
    %2753 = vmatpush1.bf16.msra.mxu0 %v1922
    %2754 = vmatprep.subr.bf16.mxu0 %v1931
    %2755 = vmatpush1.bf16.msra.mxu0 %v1930
    %2756 = vmatprep.subr.bf16.mxu0 %v1939
    %2757 = vmatpush1.bf16.msra.mxu0 %v1938
    %2758 = vmatprep.subr.bf16.mxu0 %v1947
    %2759 = vmatpush1.bf16.msra.mxu0 %v1946
    %2760 = vmatprep.subr.bf16.mxu0 %v1955
    %2761 = vmatpush1.bf16.msra.mxu0 %v1954
    %2762 = vmatprep.subr.bf16.mxu0 %v1963
    %2763 = vmatpush1.bf16.msra.mxu0 %v1962
    %2764 = vmatprep.subr.bf16.mxu0 %v1971
    %2765 = vmatpush1.bf16.msra.mxu0 %v1970
    %2766 = vmatprep.subr.bf16.mxu0 %v1979
    %2767 = vmatpush1.bf16.msra.mxu0 %v1978
    %2768 = vmatprep.subr.bf16.mxu0 %v1987
    %2769 = vmatpush1.bf16.msra.mxu0 %v1986
    %2770 = vmatprep.subr.bf16.mxu0 %v1995
    %2771 = vmatpush1.bf16.msra.mxu0 %v1994
    %2772 = vmatprep.subr.bf16.mxu0 %v2003
    %2773 = vmatpush1.bf16.msra.mxu0 %v2002
    %2774 = vmatprep.subr.bf16.mxu0 %v2011
    %2775 = vmatpush1.bf16.msra.mxu0 %v2010
    %2776 = vmatprep.subr.bf16.mxu0 %v2019
    %2777 = vmatpush1.bf16.msra.mxu0 %v2018
    %2778 = vmatprep.subr.bf16.mxu0 %v2027
    %2779 = vmatpush1.bf16.msra.mxu0 %v2026
    %2780 = vmatprep.subr.bf16.mxu0 %v2035
    %2781 = vmatpush1.bf16.msra.mxu0 %v2034
    %2782 = vmatprep.mubr.bf16.mxu0 %v495
    %2783 = vmatmul.mubr.bf16.gmra.mrb[0].mxu0 %v494
    %v2784 = vpop.f32.mrb[0].mxu0
    %v2785 = vadd.f32 %v2744, %v2784
    %v2786 = vpop.f32.mrb[0].mxu0
    %v2787 = vadd.f32 %v2746, %v2786
    %v2788 = vpop.f32.mrb[0].mxu0
    %v2789 = vpop.f32.mrb[0].mxu0
    %2790 = vdwg.mxu0
    %2791 = vmatprep.subr.bf16.mxu0 %v1661
    %2792 = vmatpush1.bf16.msra.mxu0 %v1660
    %2793 = vmatprep.subr.bf16.mxu0 %v1669
    %2794 = vmatpush1.bf16.msra.mxu0 %v1668
    %2795 = vmatprep.subr.bf16.mxu0 %v1677
    %2796 = vmatpush1.bf16.msra.mxu0 %v1676
    %2797 = vmatprep.subr.bf16.mxu0 %v1685
    %2798 = vmatpush1.bf16.msra.mxu0 %v1684
    %2799 = vmatprep.subr.bf16.mxu0 %v1693
    %2800 = vmatpush1.bf16.msra.mxu0 %v1692
    %2801 = vmatprep.subr.bf16.mxu0 %v1701
    %2802 = vmatpush1.bf16.msra.mxu0 %v1700
    %2803 = vmatprep.subr.bf16.mxu0 %v1709
    %2804 = vmatpush1.bf16.msra.mxu0 %v1708
    %2805 = vmatprep.subr.bf16.mxu0 %v1717
    %2806 = vmatpush1.bf16.msra.mxu0 %v1716
    %2807 = vmatprep.subr.bf16.mxu0 %v1725
    %2808 = vmatpush1.bf16.msra.mxu0 %v1724
    %2809 = vmatprep.subr.bf16.mxu0 %v1733
    %2810 = vmatpush1.bf16.msra.mxu0 %v1732
    %2811 = vmatprep.subr.bf16.mxu0 %v1741
    %2812 = vmatpush1.bf16.msra.mxu0 %v1740
    %2813 = vmatprep.subr.bf16.mxu0 %v1749
    %2814 = vmatpush1.bf16.msra.mxu0 %v1748
    %2815 = vmatprep.subr.bf16.mxu0 %v1757
    %2816 = vmatpush1.bf16.msra.mxu0 %v1756
    %2817 = vmatprep.subr.bf16.mxu0 %v1765
    %2818 = vmatpush1.bf16.msra.mxu0 %v1764
    %2819 = vmatprep.subr.bf16.mxu0 %v1773
    %2820 = vmatpush1.bf16.msra.mxu0 %v1772
    %2821 = vmatprep.subr.bf16.mxu0 %v1781
    %2822 = vmatpush1.bf16.msra.mxu0 %v1780
    %2823 = vmatprep.mubr.bf16.mxu0 %v491
    %2824 = vmatmul.mubr.bf16.gmra.mrb[0].mxu0 %v490
    %v2825 = vpop.f32.mrb[0].mxu0
    %v2826 = vadd.f32 %v468, %v2825
    %v2827 = vpop.f32.mrb[0].mxu0
    %v2828 = vadd.f32 %v472, %v2827
    %v2829 = vpop.f32.mrb[0].mxu0
    %v2830 = vpop.f32.mrb[0].mxu0
    %2831 = vdwg.mxu0
    %2832 = vmatprep.subr.bf16.mxu0 %v1789
    %2833 = vmatpush1.bf16.msra.mxu0 %v1788
    %2834 = vmatprep.subr.bf16.mxu0 %v1797
    %2835 = vmatpush1.bf16.msra.mxu0 %v1796
    %2836 = vmatprep.subr.bf16.mxu0 %v1805
    %2837 = vmatpush1.bf16.msra.mxu0 %v1804
    %2838 = vmatprep.subr.bf16.mxu0 %v1813
    %2839 = vmatpush1.bf16.msra.mxu0 %v1812
    %2840 = vmatprep.subr.bf16.mxu0 %v1821
    %2841 = vmatpush1.bf16.msra.mxu0 %v1820
    %2842 = vmatprep.subr.bf16.mxu0 %v1829
    %2843 = vmatpush1.bf16.msra.mxu0 %v1828
    %2844 = vmatprep.subr.bf16.mxu0 %v1837
    %2845 = vmatpush1.bf16.msra.mxu0 %v1836
    %2846 = vmatprep.subr.bf16.mxu0 %v1845
    %2847 = vmatpush1.bf16.msra.mxu0 %v1844
    %2848 = vmatprep.subr.bf16.mxu0 %v1853
    %2849 = vmatpush1.bf16.msra.mxu0 %v1852
    %2850 = vmatprep.subr.bf16.mxu0 %v1861
    %2851 = vmatpush1.bf16.msra.mxu0 %v1860
    %2852 = vmatprep.subr.bf16.mxu0 %v1869
    %2853 = vmatpush1.bf16.msra.mxu0 %v1868
    %2854 = vmatprep.subr.bf16.mxu0 %v1877
    %2855 = vmatpush1.bf16.msra.mxu0 %v1876
    %2856 = vmatprep.subr.bf16.mxu0 %v1885
    %2857 = vmatpush1.bf16.msra.mxu0 %v1884
    %2858 = vmatprep.subr.bf16.mxu0 %v1893
    %2859 = vmatpush1.bf16.msra.mxu0 %v1892
    %2860 = vmatprep.subr.bf16.mxu0 %v1901
    %2861 = vmatpush1.bf16.msra.mxu0 %v1900
    %2862 = vmatprep.subr.bf16.mxu0 %v1909
    %2863 = vmatpush1.bf16.msra.mxu0 %v1908
    %2864 = vmatprep.mubr.bf16.mxu0 %v493
    %2865 = vmatmul.mubr.bf16.gmra.mrb[0].mxu0 %v492
    %v2866 = vpop.f32.mrb[0].mxu0
    %v2867 = vadd.f32 %v2826, %v2866
    %v2868 = vpop.f32.mrb[0].mxu0
    %v2869 = vadd.f32 %v2828, %v2868
    %v2870 = vpop.f32.mrb[0].mxu0
    %v2871 = vpop.f32.mrb[0].mxu0
    %2872 = vdwg.mxu0
    %2873 = vmatprep.subr.bf16.mxu0 %v1917
    %2874 = vmatpush1.bf16.msra.mxu0 %v1916
    %2875 = vmatprep.subr.bf16.mxu0 %v1925
    %2876 = vmatpush1.bf16.msra.mxu0 %v1924
    %2877 = vmatprep.subr.bf16.mxu0 %v1933
    %2878 = vmatpush1.bf16.msra.mxu0 %v1932
    %2879 = vmatprep.subr.bf16.mxu0 %v1941
    %2880 = vmatpush1.bf16.msra.mxu0 %v1940
    %2881 = vmatprep.subr.bf16.mxu0 %v1949
    %2882 = vmatpush1.bf16.msra.mxu0 %v1948
    %2883 = vmatprep.subr.bf16.mxu0 %v1957
    %2884 = vmatpush1.bf16.msra.mxu0 %v1956
    %2885 = vmatprep.subr.bf16.mxu0 %v1965
    %2886 = vmatpush1.bf16.msra.mxu0 %v1964
    %2887 = vmatprep.subr.bf16.mxu0 %v1973
    %2888 = vmatpush1.bf16.msra.mxu0 %v1972
    %2889 = vmatprep.subr.bf16.mxu0 %v1981
    %2890 = vmatpush1.bf16.msra.mxu0 %v1980
    %2891 = vmatprep.subr.bf16.mxu0 %v1989
    %2892 = vmatpush1.bf16.msra.mxu0 %v1988
    %2893 = vmatprep.subr.bf16.mxu0 %v1997
    %2894 = vmatpush1.bf16.msra.mxu0 %v1996
    %2895 = vmatprep.subr.bf16.mxu0 %v2005
    %2896 = vmatpush1.bf16.msra.mxu0 %v2004
    %2897 = vmatprep.subr.bf16.mxu0 %v2013
    %2898 = vmatpush1.bf16.msra.mxu0 %v2012
    %2899 = vmatprep.subr.bf16.mxu0 %v2021
    %2900 = vmatpush1.bf16.msra.mxu0 %v2020
    %2901 = vmatprep.subr.bf16.mxu0 %v2029
    %2902 = vmatpush1.bf16.msra.mxu0 %v2028
    %2903 = vmatprep.subr.bf16.mxu0 %v2037
    %2904 = vmatpush1.bf16.msra.mxu0 %v2036
    %2905 = vmatprep.mubr.bf16.mxu0 %v495
    %2906 = vmatmul.mubr.bf16.gmra.mrb[0].mxu0 %v494
    %v2907 = vpop.f32.mrb[0].mxu0
    %v2908 = vadd.f32 %v2867, %v2907
    %v2909 = vpop.f32.mrb[0].mxu0
    %v2910 = vadd.f32 %v2869, %v2909
    %v2911 = vpop.f32.mrb[0].mxu0
    %v2912 = vpop.f32.mrb[0].mxu0
    %2913 = vdwg.mxu0
    %2914 = vst [vmem:[#allocation8] sm:$0xff] %v2539
    %2915 = vst [vmem:[#allocation8 + $0x8] sm:$0xff] %v2541
    %2916 = vst [vmem:[#allocation8 + $0x10] sm:$0xff] %v2662
    %2917 = vst [vmem:[#allocation8 + $0x18] sm:$0xff] %v2664
    %2918 = vst [vmem:[#allocation8 + $0x20] sm:$0xff] %v2785
    %2919 = vst [vmem:[#allocation8 + $0x28] sm:$0xff] %v2787
    %2920 = vst [vmem:[#allocation8 + $0x30] sm:$0xff] %v2908
    %2921 = vst [vmem:[#allocation8 + $0x38] sm:$0xff] %v2910
    // Predicated region
    $region26: #{tpu_custom_call.1} parent=1 // pred_check
      _
    $region27: #{tpu_custom_call.1} parent=1 // pred_check_branch
      %2923 = sbr.rel (0) target = $region29
    $region28: #{tpu_custom_call.1} parent=1 // pred_region
      %s2925 = ssub.s32 1024, 1024
      %2926 = vsyncadd [#allocation4], %s2925
      %s2928 = sshll.u32 [#allocation8], 4
      %s2929 = int_to_ptr.vmem [resolvable:$true] %s2928
      %2931 = dma.vmem_to_hbm [thread:$0]  %s2929, 1024, %s3, [#allocation4]
    $region29: #{tpu_custom_call.1} parent=1 // pred_fallthru
      _
    // Predicated region
    $region30: #{tpu_custom_call.1} parent=1 // pred_check
      _
    $region31: #{tpu_custom_call.1} parent=1 // pred_check_branch
      %2933 = sbr.rel (0) target = $region33
    $region32: #{tpu_custom_call.1} parent=1 // pred_region
      %2934 = dma.done [#allocation4], 1024
    $region33: #{tpu_custom_call.1} parent=1 // pred_fallthru
      _
    %2935 = vsyncpa [#allocation3], 1
    %2936 = vsyncpa [#allocation6], 1
    %2937 = vsyncpa [#allocation4], 1

</llo_original>
